<compile_context>
chip_gen: v7x
topology: tpu7x:2x2x1
jax: 0.10.0
libtpu: 0.0.40
codegen_flags: <defaults>
</compile_context>

<pallas_src>
import jax
import jax.numpy as jnp
from jax.experimental import pallas as pl
from jax.experimental.pallas import tpu as pltpu


def _round_up(x, m):
    return (x + m - 1) // m * m


def _sigmoid(x):
    # sigmoid(x) == 0.5 * tanh(0.5 * x) + 0.5  ->  exactly one EUP transcendental.
    return 0.5 * jnp.tanh(0.5 * x) + 0.5


def tree_lstm_kernel(hl_ref, hr_ref, cl_ref, cr_ref, w_ref, b_ref, h_ref, c_ref):
    u = h_ref.shape[1]                      # lane-aligned (multiple of 128)
    cdt = w_ref.dtype                       # MXU operand dtype (bf16)

    # Two K=U matmuls against static, 128-aligned slices of the resident packed
    # weight; activations cast to bf16 on the VMEM tile, f32 MXU accumulation.
    x = jnp.dot(hl_ref[...].astype(cdt), w_ref[:u, :],
                preferred_element_type=jnp.float32)
    x = x + jnp.dot(hr_ref[...].astype(cdt), w_ref[u:, :],
                    preferred_element_type=jnp.float32)
    x = x + b_ref[...]                      # (1, 5U) pre-summed bias, broadcast

    a  = x[:, 0 * u:1 * u]
    i  = x[:, 1 * u:2 * u]
    f1 = x[:, 2 * u:3 * u]
    f2 = x[:, 3 * u:4 * u]
    o  = x[:, 4 * u:5 * u]

    cl = cl_ref[...].astype(jnp.float32)
    cr = cr_ref[...].astype(jnp.float32)

    # Gate math in f32 (v5e has no bf16 VPU/EUP path).
    # TODO(synk): if a v5e bundle dump shows vld/vst spill saturation, chunk
    #             this block over 64-row slabs with lax.fori_loop(unroll=True).
    c = jnp.tanh(a) * _sigmoid(i) + _sigmoid(f1) * cl + _sigmoid(f2) * cr
    h = _sigmoid(o) * jnp.tanh(c)

    c_ref[...] = c.astype(c_ref.dtype)
    h_ref[...] = h.astype(h_ref.dtype)


def _choose_tile_b(batch, requested):
    """Batch tile: multiple of 16 (bf16 sublane packing); prefer >=4 grid steps
    (v7x: shard across 2 TensorCores with >=2 pipelined steps per core) while
    keeping each tile at >=128 rows of work."""
    bp16 = _round_up(batch, 16)
    tile = max(16, min(_round_up(int(requested), 16), bp16))
    while tile >= 256 and pl.cdiv(bp16, tile) < 4:
        tile = _round_up(tile // 2, 16)
    return tile


def _estimate_vmem_bytes(tile_b, up, act_bytes, cell_bytes, h_bytes, c_bytes,
                         w_bytes):
    dbl = 2                                               # pipeline double-buffering
    acts = dbl * 2 * tile_b * up * act_bytes              # hl, hr tiles
    cells = dbl * 2 * tile_b * up * cell_bytes            # cl, cr tiles
    outs = dbl * tile_b * up * (h_bytes + c_bytes)        # h, c tiles
    wgt = dbl * (2 * up) * (5 * up) * w_bytes + dbl * 5 * up * 4
    scratch = 2 * tile_b * 5 * up * 4                     # f32 gate intermediate
    return acts + cells + outs + wgt + scratch


def tree_lstm_forward(left_in, right_in, params, *, tile_b=512,
                      compute_dtype=jnp.bfloat16, h_dtype=None, c_dtype=None):
    """left_in/right_in: tuples (h, c) of shape (B, U).
    params: (W, b) with W = concat([Wl^T, Wr^T], axis=0) of shape (2U, 5U)
    (ideally already in compute_dtype) and b = (bl + br) of shape (1, 5U)."""
    hl, cl = left_in
    hr, cr = right_in
    w, b = params

    B, U = hl.shape
    h_dtype = hl.dtype if h_dtype is None else h_dtype
    c_dtype = cl.dtype if c_dtype is None else c_dtype

    # No-ops when params were packed by init_params (the recommended path).
    w = w.astype(compute_dtype)
    b = b.astype(jnp.float32)

    # --- pad feature dim to a lane-aligned multiple of 128 --------------------
    Up = _round_up(U, 128)
    if Up != U:
        padf = [(0, 0), (0, Up - U)]
        hl, hr = jnp.pad(hl, padf), jnp.pad(hr, padf)
        cl, cr = jnp.pad(cl, padf), jnp.pad(cr, padf)
        w = w.reshape(2, U, 5, U)
        w = jnp.pad(w, [(0, 0), (0, Up - U), (0, 0), (0, Up - U)])
        w = w.reshape(2 * Up, 5 * Up)
        b = b.reshape(5, U)
        b = jnp.pad(b, [(0, 0), (0, Up - U)]).reshape(1, 5 * Up)

    # --- pad batch to a multiple of the (16-aligned) batch tile ---------------
    tile_b = _choose_tile_b(B, tile_b)
    Bp = _round_up(B, tile_b)
    if Bp != B:
        padb = [(0, Bp - B), (0, 0)]
        hl, hr = jnp.pad(hl, padb), jnp.pad(hr, padb)
        cl, cr = jnp.pad(cl, padb), jnp.pad(cr, padb)

    grid = (Bp // tile_b,)

    act_spec = pl.BlockSpec((tile_b, Up),     lambda i: (i, 0))
    w_spec   = pl.BlockSpec((2 * Up, 5 * Up), lambda i: (0, 0))
    b_spec   = pl.BlockSpec((1, 5 * Up),      lambda i: (0, 0))
    out_spec = pl.BlockSpec((tile_b, Up),     lambda i: (i, 0))

    est = _estimate_vmem_bytes(
        tile_b, Up,
        hl.dtype.itemsize, cl.dtype.itemsize,
        jnp.dtype(h_dtype).itemsize, jnp.dtype(c_dtype).itemsize,
        jnp.dtype(compute_dtype).itemsize)
    vmem_limit = int(min(max(32 << 20, 2 * est), 64 << 20))   # <= v7x physical VMEM

    h_out, c_out = pl.pallas_call(
        tree_lstm_kernel,
        out_shape=(jax.ShapeDtypeStruct((Bp, Up), h_dtype),
                   jax.ShapeDtypeStruct((Bp, Up), c_dtype)),
        grid_spec=pltpu.PrefetchScalarGridSpec(
            num_scalar_prefetch=0,
            grid=grid,
            in_specs=[act_spec, act_spec, act_spec, act_spec, w_spec, b_spec],
            out_specs=[out_spec, out_spec],
        ),
        compiler_params=pltpu.CompilerParams(
            dimension_semantics=("parallel",),
            vmem_limit_bytes=vmem_limit,
        ),
    )(hl, hr, cl, cr, w, b)

    if Bp != B or Up != U:
        h_out = h_out[:B, :U]
        c_out = c_out[:B, :U]
    return h_out, c_out


def init_params(key, num_units, dtype=jnp.float32, compute_dtype=jnp.bfloat16):
    """Mimic nn.Linear default init.  Returns (packed, raw):
       packed: W = concat([Wl^T, Wr^T], axis=0) in compute_dtype (2U, 5U),
               b = (bl + br) in f32 (1, 5U)  -- cast ONCE here, not per call.
       raw:    (wl, bl, wr, br) in f32 for the pure-JAX reference."""
    k = 1.0 / jnp.sqrt(jnp.asarray(num_units, dtype))
    kwl, kbl, kwr, kbr = jax.random.split(key, 4)
    wl = jax.random.uniform(kwl, (5 * num_units, num_units), dtype, -k, k)
    bl = jax.random.uniform(kbl, (5 * num_units,), dtype, -k, k)
    wr = jax.random.uniform(kwr, (5 * num_units, num_units), dtype, -k, k)
    br = jax.random.uniform(kbr, (5 * num_units,), dtype, -k, k)
    w_packed = jnp.concatenate([wl.T, wr.T], axis=0).astype(compute_dtype)
    b_packed = ((bl + br)[None, :]).astype(jnp.float32)
    return (w_packed, b_packed), (wl, bl, wr, br)


def tree_lstm_reference(left_in, right_in, raw_params):
    """Pure f32 JAX reference with the same semantics as the PyTorch module."""
    hl, cl = left_in
    hr, cr = right_in
    wl, bl, wr, br = raw_params
    x = hl @ wl.T + bl + hr @ wr.T + br
    u = hl.shape[1]
    a, i, f1, f2, o = [x[:, k * u:(k + 1) * u] for k in range(5)]
    c = jnp.tanh(a) * jax.nn.sigmoid(i) + jax.nn.sigmoid(f1) * cl + jax.nn.sigmoid(f2) * cr
    h = jax.nn.sigmoid(o) * jnp.tanh(c)
    return h, c


if __name__ == "__main__":
    # Batched same-depth tree nodes.  Small shapes that exercise both the
    # lane-padding (U=96 -> 128) and batch-padding (B=160 -> 192) paths and a
    # multi-step grid (tile_b=64 -> 3 steps).
    B, U = 160, 96

    key = jax.random.PRNGKey(0)
    kp, k1, k2, k3, k4 = jax.random.split(key, 5)

    packed_params, raw_params = init_params(kp, U)
    left_in  = (jax.random.normal(k1, (B, U), jnp.float32),
                jax.random.normal(k2, (B, U), jnp.float32))
    right_in = (jax.random.normal(k3, (B, U), jnp.float32),
                jax.random.normal(k4, (B, U), jnp.float32))

    h, c = tree_lstm_forward(left_in, right_in, packed_params, tile_b=64)
    jax.block_until_ready((h, c))

    h_ref, c_ref = tree_lstm_reference(left_in, right_in, raw_params)
    assert h.shape == (B, U) and c.shape == (B, U)
    # bf16 matmul operands vs f32 reference -> modest tolerance.
    assert jnp.allclose(h, h_ref, atol=5e-2, rtol=5e-2), "h mismatch"
    assert jnp.allclose(c, c_ref, atol=5e-2, rtol=5e-2), "c mismatch"

    print("KERNEL_OK")
</pallas_src>

<mosaic_0001>
module attributes {stable_mosaic.version = 11 : i64} {
  func.func @tree_lstm_kernel(%arg0: i32, %arg1: memref<64x128xf32, #tpu.memory_space<vmem>>, %arg2: memref<64x128xf32, #tpu.memory_space<vmem>>, %arg3: memref<64x128xf32, #tpu.memory_space<vmem>>, %arg4: memref<64x128xf32, #tpu.memory_space<vmem>>, %arg5: memref<256x640xbf16, #tpu.memory_space<vmem>>, %arg6: memref<1x640xf32, #tpu.memory_space<vmem>>, %arg7: memref<64x128xf32, #tpu.memory_space<vmem>>, %arg8: memref<64x128xf32, #tpu.memory_space<vmem>>) attributes {dimension_semantics = [#tpu.dimension_semantics<parallel>], iteration_bounds = array<i64: 3>, scalar_prefetch = 0 : i64, scratch_operands = 0 : i64, tpu.core_type = #tpu.core_type<tc>, window_params = [{transform_indices = @transform_0, window_bounds = array<i64: 64, 128>}, {transform_indices = @transform_1, window_bounds = array<i64: 64, 128>}, {transform_indices = @transform_2, window_bounds = array<i64: 64, 128>}, {transform_indices = @transform_3, window_bounds = array<i64: 64, 128>}, {pipeline_mode = #tpu.pipeline_mode<synchronous>, transform_indices = @transform_4, window_bounds = array<i64: 256, 640>}, {pipeline_mode = #tpu.pipeline_mode<synchronous>, transform_indices = @transform_5, window_bounds = array<i64: 1, 640>}, {transform_indices = @transform_6, window_bounds = array<i64: 64, 128>}, {transform_indices = @transform_7, window_bounds = array<i64: 64, 128>}]} {
    %c0 = arith.constant 0 : index
    %c0_0 = arith.constant 0 : index
    %0 = vector.load %arg1[%c0, %c0_0] : memref<64x128xf32, #tpu.memory_space<vmem>>, vector<64x128xf32>
    %1 = arith.truncf %0 : vector<64x128xf32> to vector<64x128xbf16>
    %c0_1 = arith.constant 0 : index
    %c0_2 = arith.constant 0 : index
    %2 = vector.load %arg5[%c0_1, %c0_2] : memref<256x640xbf16, #tpu.memory_space<vmem>>, vector<128x640xbf16>
    %cst = arith.constant dense<0.000000e+00> : vector<64x640xf32>
    %3 = tpu.matmul %1, %2, %cst {dimension_numbers = #tpu.dot_dimension_numbers<[1], [0], [0], [1], [0, 0, 1, 1], [], []>} : vector<64x128xbf16>, vector<128x640xbf16>, vector<64x640xf32> -> vector<64x640xf32>
    %c0_3 = arith.constant 0 : index
    %c0_4 = arith.constant 0 : index
    %4 = vector.load %arg2[%c0_3, %c0_4] : memref<64x128xf32, #tpu.memory_space<vmem>>, vector<64x128xf32>
    %5 = arith.truncf %4 : vector<64x128xf32> to vector<64x128xbf16>
    %c128 = arith.constant 128 : index
    %c0_5 = arith.constant 0 : index
    %6 = vector.load %arg5[%c128, %c0_5] : memref<256x640xbf16, #tpu.memory_space<vmem>>, vector<128x640xbf16>
    %cst_6 = arith.constant dense<0.000000e+00> : vector<64x640xf32>
    %7 = tpu.matmul %5, %6, %cst_6 {dimension_numbers = #tpu.dot_dimension_numbers<[1], [0], [0], [1], [0, 0, 1, 1], [], []>} : vector<64x128xbf16>, vector<128x640xbf16>, vector<64x640xf32> -> vector<64x640xf32>
    %8 = arith.addf %3, %7 : vector<64x640xf32>
    %c0_7 = arith.constant 0 : index
    %c0_8 = arith.constant 0 : index
    %9 = vector.load %arg6[%c0_7, %c0_8] : memref<1x640xf32, #tpu.memory_space<vmem>>, vector<1x640xf32>
    %10 = vector.broadcast %9 : vector<1x640xf32> to vector<64x640xf32>
    %11 = arith.addf %8, %10 : vector<64x640xf32>
    %12 = vector.extract_strided_slice %11 {offsets = [0, 0], sizes = [64, 128], strides = [1, 1]} : vector<64x640xf32> to vector<64x128xf32>
    %13 = vector.extract_strided_slice %11 {offsets = [0, 128], sizes = [64, 128], strides = [1, 1]} : vector<64x640xf32> to vector<64x128xf32>
    %14 = vector.extract_strided_slice %11 {offsets = [0, 256], sizes = [64, 128], strides = [1, 1]} : vector<64x640xf32> to vector<64x128xf32>
    %15 = vector.extract_strided_slice %11 {offsets = [0, 384], sizes = [64, 128], strides = [1, 1]} : vector<64x640xf32> to vector<64x128xf32>
    %16 = vector.extract_strided_slice %11 {offsets = [0, 512], sizes = [64, 128], strides = [1, 1]} : vector<64x640xf32> to vector<64x128xf32>
    %c0_9 = arith.constant 0 : index
    %c0_10 = arith.constant 0 : index
    %17 = vector.load %arg3[%c0_9, %c0_10] : memref<64x128xf32, #tpu.memory_space<vmem>>, vector<64x128xf32>
    %c0_11 = arith.constant 0 : index
    %c0_12 = arith.constant 0 : index
    %18 = vector.load %arg4[%c0_11, %c0_12] : memref<64x128xf32, #tpu.memory_space<vmem>>, vector<64x128xf32>
    %19 = math.tanh %12 : vector<64x128xf32>
    %cst_13 = arith.constant 5.000000e-01 : f32
    %20 = vector.broadcast %cst_13 : f32 to vector<64x128xf32>
    %21 = arith.mulf %20, %13 : vector<64x128xf32>
    %22 = math.tanh %21 : vector<64x128xf32>
    %cst_14 = arith.constant 5.000000e-01 : f32
    %23 = vector.broadcast %cst_14 : f32 to vector<64x128xf32>
    %24 = arith.mulf %23, %22 : vector<64x128xf32>
    %cst_15 = arith.constant 5.000000e-01 : f32
    %25 = vector.broadcast %cst_15 : f32 to vector<64x128xf32>
    %26 = arith.addf %24, %25 : vector<64x128xf32>
    %27 = arith.mulf %19, %26 : vector<64x128xf32>
    %cst_16 = arith.constant 5.000000e-01 : f32
    %28 = vector.broadcast %cst_16 : f32 to vector<64x128xf32>
    %29 = arith.mulf %28, %14 : vector<64x128xf32>
    %30 = math.tanh %29 : vector<64x128xf32>
    %cst_17 = arith.constant 5.000000e-01 : f32
    %31 = vector.broadcast %cst_17 : f32 to vector<64x128xf32>
    %32 = arith.mulf %31, %30 : vector<64x128xf32>
    %cst_18 = arith.constant 5.000000e-01 : f32
    %33 = vector.broadcast %cst_18 : f32 to vector<64x128xf32>
    %34 = arith.addf %32, %33 : vector<64x128xf32>
    %35 = arith.mulf %34, %17 : vector<64x128xf32>
    %36 = arith.addf %27, %35 : vector<64x128xf32>
    %cst_19 = arith.constant 5.000000e-01 : f32
    %37 = vector.broadcast %cst_19 : f32 to vector<64x128xf32>
    %38 = arith.mulf %37, %15 : vector<64x128xf32>
    %39 = math.tanh %38 : vector<64x128xf32>
    %cst_20 = arith.constant 5.000000e-01 : f32
    %40 = vector.broadcast %cst_20 : f32 to vector<64x128xf32>
    %41 = arith.mulf %40, %39 : vector<64x128xf32>
    %cst_21 = arith.constant 5.000000e-01 : f32
    %42 = vector.broadcast %cst_21 : f32 to vector<64x128xf32>
    %43 = arith.addf %41, %42 : vector<64x128xf32>
    %44 = arith.mulf %43, %18 : vector<64x128xf32>
    %45 = arith.addf %36, %44 : vector<64x128xf32>
    %cst_22 = arith.constant 5.000000e-01 : f32
    %46 = vector.broadcast %cst_22 : f32 to vector<64x128xf32>
    %47 = arith.mulf %46, %16 : vector<64x128xf32>
    %48 = math.tanh %47 : vector<64x128xf32>
    %cst_23 = arith.constant 5.000000e-01 : f32
    %49 = vector.broadcast %cst_23 : f32 to vector<64x128xf32>
    %50 = arith.mulf %49, %48 : vector<64x128xf32>
    %cst_24 = arith.constant 5.000000e-01 : f32
    %51 = vector.broadcast %cst_24 : f32 to vector<64x128xf32>
    %52 = arith.addf %50, %51 : vector<64x128xf32>
    %53 = math.tanh %45 : vector<64x128xf32>
    %54 = arith.mulf %52, %53 : vector<64x128xf32>
    %c0_25 = arith.constant 0 : index
    %c0_26 = arith.constant 0 : index
    %55 = vector.load %arg8[%c0_25, %c0_26] : memref<64x128xf32, #tpu.memory_space<vmem>>, vector<64x128xf32>
    tpu.vector_store %arg8[%c0_25, %c0_26], %45 {strides = array<i32>} : memref<64x128xf32, #tpu.memory_space<vmem>>, vector<64x128xf32>,
    %c0_27 = arith.constant 0 : index
    %c0_28 = arith.constant 0 : index
    %56 = vector.load %arg7[%c0_27, %c0_28] : memref<64x128xf32, #tpu.memory_space<vmem>>, vector<64x128xf32>
    tpu.vector_store %arg7[%c0_27, %c0_28], %54 {strides = array<i32>} : memref<64x128xf32, #tpu.memory_space<vmem>>, vector<64x128xf32>,
    return
  }
  func.func @transform_0(%arg0: i32) -> (i32, i32) {
    %c0_i32 = arith.constant 0 : i32
    %c0_i32_0 = arith.constant 0 : i32
    return %arg0, %c0_i32 : i32, i32
  }
  func.func @transform_1(%arg0: i32) -> (i32, i32) {
    %c0_i32 = arith.constant 0 : i32
    %c0_i32_0 = arith.constant 0 : i32
    return %arg0, %c0_i32 : i32, i32
  }
  func.func @transform_2(%arg0: i32) -> (i32, i32) {
    %c0_i32 = arith.constant 0 : i32
    %c0_i32_0 = arith.constant 0 : i32
    return %arg0, %c0_i32 : i32, i32
  }
  func.func @transform_3(%arg0: i32) -> (i32, i32) {
    %c0_i32 = arith.constant 0 : i32
    %c0_i32_0 = arith.constant 0 : i32
    return %arg0, %c0_i32 : i32, i32
  }
  func.func @transform_4(%arg0: i32) -> (i32, i32) {
    %c0_i32 = arith.constant 0 : i32
    %c0_i32_0 = arith.constant 0 : i32
    %c0_i32_1 = arith.constant 0 : i32
    return %c0_i32, %c0_i32_0 : i32, i32
  }
  func.func @transform_5(%arg0: i32) -> (i32, i32) {
    %c0_i32 = arith.constant 0 : i32
    %c0_i32_0 = arith.constant 0 : i32
    %c0_i32_1 = arith.constant 0 : i32
    return %c0_i32, %c0_i32_0 : i32, i32
  }
  func.func @transform_6(%arg0: i32) -> (i32, i32) {
    %c0_i32 = arith.constant 0 : i32
    %c0_i32_0 = arith.constant 0 : i32
    return %arg0, %c0_i32 : i32, i32
  }
  func.func @transform_7(%arg0: i32) -> (i32, i32) {
    %c0_i32 = arith.constant 0 : i32
    %c0_i32_0 = arith.constant 0 : i32
    return %arg0, %c0_i32 : i32, i32
  }
}

</mosaic_0001>

<llo_original>
// kernel: tpu_custom_call.1
$region0: #{tpu_custom_call.1}
  #allocation0 [shape = 'u32[]', space=smem, size = 0x4, offset = 0x4, fixed_abs, tag = 'smem constant byte address 0x4 - core index']
  #allocation1 [shape = 'u32[144,128]{1,0:T(1,128)}', space=vmem, size = 0x12000, scoped, tag = 'internal scratch']
  %s0 = inlined_call_operand.hbm [shape: f32[192,128], index: 0, kind: input, shape index: {}]
  %s1 = inlined_call_operand.hbm [shape: f32[192,128], index: 1, kind: input, shape index: {}]
  %s2 = inlined_call_operand.hbm [shape: f32[192,128], index: 2, kind: input, shape index: {}]
  %s3 = inlined_call_operand.hbm [shape: f32[192,128], index: 3, kind: input, shape index: {}]
  %s4 = inlined_call_operand.hbm [shape: bf16[256,640], index: 4, kind: input, shape index: {}]
  %s5 = inlined_call_operand.vmem [shape: f32[1,640], index: 5, kind: input, shape index: {}]
  %s6 = inlined_call_operand.hbm [shape: f32[192,128], index: 6, kind: output, shape index: {0}]
  %s7 = inlined_call_operand.hbm [shape: f32[192,128], index: 7, kind: output, shape index: {1}]
  %8 = xla_tuple %s6, %s7
  %s9 = sld [smem:[#allocation0]]
  $region85: #{tpu_custom_call.1} parent=0
    _
  %s11 = ssub.s32 1, %s9
  %s12 = scalar_select 0, %s11, %s9
  $region1: #{tpu_custom_call.1} parent=0
    #allocation2 [shape = 'u8[65536]{0}', space=vmem, size = 0x10000, scoped, tag = 'input window, operand 0']
    #allocation3 [shape = 's32[2]{0}', space=sflag, size = 0x8, scoped, tag = 'scoped memory for tpu_custom_call.1']
    #allocation4 [shape = 's32[2]{0}', space=sflag, size = 0x8, scoped, tag = 'scoped memory for tpu_custom_call.1']
    #allocation5 [shape = 'u8[65536]{0}', space=vmem, size = 0x10000, scoped, tag = 'input window, operand 1']
    #allocation6 [shape = 's32[2]{0}', space=sflag, size = 0x8, scoped, tag = 'scoped memory for tpu_custom_call.1']
    #allocation7 [shape = 'u8[65536]{0}', space=vmem, size = 0x10000, scoped, tag = 'input window, operand 2']
    #allocation8 [shape = 'u8[65536]{0}', space=vmem, size = 0x10000, scoped, tag = 'input window, operand 3']
    #allocation9 [shape = 's32[2]{0}', space=sflag, size = 0x8, scoped, tag = 'scoped memory for tpu_custom_call.1']
    #allocation10 [shape = 'u8[327680]{0}', space=vmem, size = 0x50000, scoped, tag = 'input window, operand 4, single buffered']
    #allocation11 [shape = 'u8[65536]{0}', space=vmem, size = 0x10000, scoped, tag = 'output window, operand 0']
    #allocation12 [shape = 'u8[65536]{0}', space=vmem, size = 0x10000, scoped, tag = 'output window, operand 1']
    #allocation13 [shape = 's32[2]{0}', space=sflag, size = 0x8, scoped, tag = 'scoped memory for tpu_custom_call.1']
    %13 = vsyncpa [#allocation3], 0
    %s14 = scalar_lea.sflag [#allocation3], 1
    %15 = vsyncpa %s14, 0
    %16 = vsyncpa [#allocation6], 0
    %s17 = scalar_lea.sflag [#allocation6], 1
    %18 = vsyncpa %s17, 0
    %19 = vsyncpa [#allocation9], 0
    %s20 = scalar_lea.sflag [#allocation9], 1
    %21 = vsyncpa %s20, 0
    %22 = vsyncpa [#allocation4], 0
    %s23 = scalar_lea.sflag [#allocation4], 1
    %24 = vsyncpa %s23, 0
    %25 = vsyncpa [#allocation13], 0
    %s26 = scalar_lea.sflag [#allocation13], 1
    %27 = vsyncpa %s26, 0
    loop: start=0, step=1, limit=5
    $region2: #{tpu_custom_call.1} parent=1 // loop_pre_header
      _
    $region3: #{tpu_custom_call.1} parent=1 // loop_header
      %s29 = sphi 0, %s33
      %p30 = scmp.ge.s32.totalorder %s29, 5
      %s39 = sphi 0, %s41
      %s42 = sphi 0, %s39
      %s43 = sphi 0, %s42
      %s59 = sphi 0, %s43
      %s65 = sphi 0, %s67
      %s68 = sphi 0, %s65
      %s69 = sphi 0, %s68
      %s85 = sphi 0, %s69
      %s91 = sphi 0, %s93
      %s94 = sphi 0, %s91
      %s95 = sphi 0, %s94
      %s111 = sphi 0, %s95
      %s117 = sphi 0, %s119
      %s120 = sphi 0, %s117
      %s121 = sphi 0, %s120
      %s137 = sphi 0, %s121
      %s141 = sphi 0, %s141
      %s143 = sphi 0, %s141
      %s144 = sphi 0, %s143
      %s158 = sphi 0, %s144
      %s162 = sphi 0, %s162
      %s164 = sphi 0, %s162
      %s165 = sphi 0, %s164
      %s179 = sphi 0, %s165
      %s185 = sphi 0, %s187
      %s188 = sphi 0, %s185
      %s189 = sphi 0, %s188
      %s205 = sphi 0, %s189
      %s211 = sphi 0, %s213
      %s214 = sphi 0, %s211
      %s215 = sphi 0, %s214
      %s231 = sphi 0, %s215
    $region4: #{tpu_custom_call.1} parent=1 // loop_header_branch
      %32 = sbr.rel (%p30) target = $region8
    $region5: #{tpu_custom_call.1} parent=1 // loop_body
      %s34 = ssub.s32 %s29, 1
      %s35 = ssub.s32 %s29, 2
      %s36 = sadd.s32 %s29, 1
      %s37 = ssub.s32 %s29, %s36
      %p38 = scmp.eq.s32.totalorder %s37, 0
      %s40 = sadd.s32 %s39, 1
      %s41 = scalar_select %p38, %s39, %s40
      %p44 = pneg %p38
      %p45 = scmp.eq.s32.totalorder %s29, 2
      %p46 = por %p44, %p45
      %p47 = scmp.ne.s32.totalorder %s39, %s42
      %p48 = scmp.eq.s32.totalorder %s29, 0
      %p49 = por %p47, %p48
      %p50 = scmp.ne.s32.totalorder %s39, %s42
      %p51 = scmp.eq.s32.totalorder %s34, 2
      %p52 = por %p50, %p51
      %p53 = scmp.ne.s32.totalorder %s42, %s43
      %p54 = scmp.eq.s32.totalorder %s34, 0
      %p55 = por %p53, %p54
      %p56 = scmp.ne.s32.totalorder %s42, %s43
      %p57 = scmp.eq.s32.totalorder %s35, 2
      %p58 = por %p56, %p57
      %p60 = scmp.ne.s32.totalorder %s43, %s59
      %p61 = scmp.eq.s32.totalorder %s35, 0
      %p62 = por %p60, %p61
      %s63 = ssub.s32 %s29, %s36
      %p64 = scmp.eq.s32.totalorder %s63, 0
      %s66 = sadd.s32 %s65, 1
      %s67 = scalar_select %p64, %s65, %s66
      %p70 = pneg %p64
      %p71 = scmp.eq.s32.totalorder %s29, 2
      %p72 = por %p70, %p71
      %p73 = scmp.ne.s32.totalorder %s65, %s68
      %p74 = scmp.eq.s32.totalorder %s29, 0
      %p75 = por %p73, %p74
      %p76 = scmp.ne.s32.totalorder %s65, %s68
      %p77 = scmp.eq.s32.totalorder %s34, 2
      %p78 = por %p76, %p77
      %p79 = scmp.ne.s32.totalorder %s68, %s69
      %p80 = scmp.eq.s32.totalorder %s34, 0
      %p81 = por %p79, %p80
      %p82 = scmp.ne.s32.totalorder %s68, %s69
      %p83 = scmp.eq.s32.totalorder %s35, 2
      %p84 = por %p82, %p83
      %p86 = scmp.ne.s32.totalorder %s69, %s85
      %p87 = scmp.eq.s32.totalorder %s35, 0
      %p88 = por %p86, %p87
      %s89 = ssub.s32 %s29, %s36
      %p90 = scmp.eq.s32.totalorder %s89, 0
      %s92 = sadd.s32 %s91, 1
      %s93 = scalar_select %p90, %s91, %s92
      %p96 = pneg %p90
      %p97 = scmp.eq.s32.totalorder %s29, 2
      %p98 = por %p96, %p97
      %p99 = scmp.ne.s32.totalorder %s91, %s94
      %p100 = scmp.eq.s32.totalorder %s29, 0
      %p101 = por %p99, %p100
      %p102 = scmp.ne.s32.totalorder %s91, %s94
      %p103 = scmp.eq.s32.totalorder %s34, 2
      %p104 = por %p102, %p103
      %p105 = scmp.ne.s32.totalorder %s94, %s95
      %p106 = scmp.eq.s32.totalorder %s34, 0
      %p107 = por %p105, %p106
      %p108 = scmp.ne.s32.totalorder %s94, %s95
      %p109 = scmp.eq.s32.totalorder %s35, 2
      %p110 = por %p108, %p109
      %p112 = scmp.ne.s32.totalorder %s95, %s111
      %p113 = scmp.eq.s32.totalorder %s35, 0
      %p114 = por %p112, %p113
      %s115 = ssub.s32 %s29, %s36
      %p116 = scmp.eq.s32.totalorder %s115, 0
      %s118 = sadd.s32 %s117, 1
      %s119 = scalar_select %p116, %s117, %s118
      %p122 = pneg %p116
      %p123 = scmp.eq.s32.totalorder %s29, 2
      %p124 = por %p122, %p123
      %p125 = scmp.ne.s32.totalorder %s117, %s120
      %p126 = scmp.eq.s32.totalorder %s29, 0
      %p127 = por %p125, %p126
      %p128 = scmp.ne.s32.totalorder %s117, %s120
      %p129 = scmp.eq.s32.totalorder %s34, 2
      %p130 = por %p128, %p129
      %p131 = scmp.ne.s32.totalorder %s120, %s121
      %p132 = scmp.eq.s32.totalorder %s34, 0
      %p133 = por %p131, %p132
      %p134 = scmp.ne.s32.totalorder %s120, %s121
      %p135 = scmp.eq.s32.totalorder %s35, 2
      %p136 = por %p134, %p135
      %p138 = scmp.ne.s32.totalorder %s121, %s137
      %p139 = scmp.eq.s32.totalorder %s35, 0
      %p140 = por %p138, %p139
      %s142 = sadd.s32 %s141, 1
      %p145 = scmp.eq.s32.totalorder %s29, 2
      %p146 = scmp.ne.s32.totalorder %s141, %s143
      %p147 = scmp.eq.s32.totalorder %s29, 0
      %p148 = por %p146, %p147
      %p149 = scmp.ne.s32.totalorder %s141, %s143
      %p150 = scmp.eq.s32.totalorder %s34, 2
      %p151 = por %p149, %p150
      %p152 = scmp.ne.s32.totalorder %s143, %s144
      %p153 = scmp.eq.s32.totalorder %s34, 0
      %p154 = por %p152, %p153
      %p155 = scmp.ne.s32.totalorder %s143, %s144
      %p156 = scmp.eq.s32.totalorder %s35, 2
      %p157 = por %p155, %p156
      %p159 = scmp.ne.s32.totalorder %s144, %s158
      %p160 = scmp.eq.s32.totalorder %s35, 0
      %p161 = por %p159, %p160
      %s163 = sadd.s32 %s162, 1
      %p166 = scmp.eq.s32.totalorder %s29, 2
      %p167 = scmp.ne.s32.totalorder %s162, %s164
      %p168 = scmp.eq.s32.totalorder %s29, 0
      %p169 = por %p167, %p168
      %p170 = scmp.ne.s32.totalorder %s162, %s164
      %p171 = scmp.eq.s32.totalorder %s34, 2
      %p172 = por %p170, %p171
      %p173 = scmp.ne.s32.totalorder %s164, %s165
      %p174 = scmp.eq.s32.totalorder %s34, 0
      %p175 = por %p173, %p174
      %p176 = scmp.ne.s32.totalorder %s164, %s165
      %p177 = scmp.eq.s32.totalorder %s35, 2
      %p178 = por %p176, %p177
      %p180 = scmp.ne.s32.totalorder %s165, %s179
      %p181 = scmp.eq.s32.totalorder %s35, 0
      %p182 = por %p180, %p181
      %s183 = ssub.s32 %s29, %s36
      %p184 = scmp.eq.s32.totalorder %s183, 0
      %s186 = sadd.s32 %s185, 1
      %s187 = scalar_select %p184, %s185, %s186
      %p190 = pneg %p184
      %p191 = scmp.eq.s32.totalorder %s29, 2
      %p192 = por %p190, %p191
      %p193 = scmp.ne.s32.totalorder %s185, %s188
      %p194 = scmp.eq.s32.totalorder %s29, 0
      %p195 = por %p193, %p194
      %p196 = scmp.ne.s32.totalorder %s185, %s188
      %p197 = scmp.eq.s32.totalorder %s34, 2
      %p198 = por %p196, %p197
      %p199 = scmp.ne.s32.totalorder %s188, %s189
      %p200 = scmp.eq.s32.totalorder %s34, 0
      %p201 = por %p199, %p200
      %p202 = scmp.ne.s32.totalorder %s188, %s189
      %p203 = scmp.eq.s32.totalorder %s35, 2
      %p204 = por %p202, %p203
      %p206 = scmp.ne.s32.totalorder %s189, %s205
      %p207 = scmp.eq.s32.totalorder %s35, 0
      %p208 = por %p206, %p207
      %s209 = ssub.s32 %s29, %s36
      %p210 = scmp.eq.s32.totalorder %s209, 0
      %s212 = sadd.s32 %s211, 1
      %s213 = scalar_select %p210, %s211, %s212
      %p216 = pneg %p210
      %p217 = scmp.eq.s32.totalorder %s29, 2
      %p218 = por %p216, %p217
      %p219 = scmp.ne.s32.totalorder %s211, %s214
      %p220 = scmp.eq.s32.totalorder %s29, 0
      %p221 = por %p219, %p220
      %p222 = scmp.ne.s32.totalorder %s211, %s214
      %p223 = scmp.eq.s32.totalorder %s34, 2
      %p224 = por %p222, %p223
      %p225 = scmp.ne.s32.totalorder %s214, %s215
      %p226 = scmp.eq.s32.totalorder %s34, 0
      %p227 = por %p225, %p226
      %p228 = scmp.ne.s32.totalorder %s214, %s215
      %p229 = scmp.eq.s32.totalorder %s35, 2
      %p230 = por %p228, %p229
      %p232 = scmp.ne.s32.totalorder %s215, %s231
      %p233 = scmp.eq.s32.totalorder %s35, 0
      %p234 = por %p232, %p233
      %p235 = scmp.le.s32.totalorder 1, %s29
      %p236 = scmp.lt.s32.totalorder %s29, 4
      %p237 = pnand %p235, %p236
      %p238 = pneg %p237
      // Predicated region
      $region9: #{tpu_custom_call.1} parent=5 // pred_check
        _
      $region10: #{tpu_custom_call.1} parent=5 // pred_check_branch
        %240 = sbr.rel (%p237) target = $region12
      $region11: #{tpu_custom_call.1} parent=5 // pred_region
        %s241 = ssub.s32 %s29, 1
        // Predicated region
        $region13: #{tpu_custom_call.1} parent=11 // pred_check
          %p242 = pneg %p154
        $region14: #{tpu_custom_call.1} parent=11 // pred_check_branch
          %244 = sbr.rel (%p242) target = $region16
        $region15: #{tpu_custom_call.1} parent=11 // pred_region
          %s246 = ssub.s32 10240, 10240
          %247 = vsyncadd [#allocation9], %s246
          %s248 = sshll.u32 [#allocation10], 4
          %s249 = int_to_ptr.vmem [resolvable:$true] %s248
          %254 = dma.hbm_to_vmem [thread:$0]  %s4, 10240, %s249, [#allocation9], 320, 320, 20
        $region16: #{tpu_custom_call.1} parent=11 // pred_fallthru
          _
        // Predicated region
        $region17: #{tpu_custom_call.1} parent=11 // pred_check
          %p255 = pneg %p175
        $region18: #{tpu_custom_call.1} parent=11 // pred_check_branch
          %257 = sbr.rel (%p255) target = $region20
        $region19: #{tpu_custom_call.1} parent=11 // pred_region
          _
        $region20: #{tpu_custom_call.1} parent=11 // pred_fallthru
          _
      $region12: #{tpu_custom_call.1} parent=5 // pred_fallthru
        _
      %p258 = scmp.lt.s32.totalorder %s29, 3
      // Predicated region
      $region21: #{tpu_custom_call.1} parent=5 // pred_check
        %p259 = pneg %p258
      $region22: #{tpu_custom_call.1} parent=5 // pred_check_branch
        %261 = sbr.rel (%p259) target = $region24
      $region23: #{tpu_custom_call.1} parent=5 // pred_region
        // Predicated region
        $region25: #{tpu_custom_call.1} parent=23 // pred_check
          %p262 = pneg %p49
        $region26: #{tpu_custom_call.1} parent=23 // pred_check_branch
          %264 = sbr.rel (%p262) target = $region28
        $region27: #{tpu_custom_call.1} parent=23 // pred_region
          %s265 = sand.u32 %s39, 1
          %s266 = scalar_lea.sflag [#allocation3], %s265
          %s267 = sand.u32 %s39, 1
          %s268 = smul.addr %s267, 64
          %s269 = scalar_lea.vmem [#allocation2], %s268
          %s270 = smul.u32 8, %s29
          %s272 = ssub.s32 1024, 1024
          %273 = vsyncadd %s266, %s272
          %s274 = smul.addr %s270, 128
          %s275 = scalar_lea.hbm %s0, %s274
          %s276 = sshll.u32 %s269, 4
          %s277 = int_to_ptr.vmem [resolvable:$true] %s276
          %282 = dma.hbm_to_vmem [thread:$0]  %s275, 1024, %s277, %s266, 128, 128, 8
        $region28: #{tpu_custom_call.1} parent=23 // pred_fallthru
          _
        // Predicated region
        $region29: #{tpu_custom_call.1} parent=23 // pred_check
          %p283 = pneg %p75
        $region30: #{tpu_custom_call.1} parent=23 // pred_check_branch
          %285 = sbr.rel (%p283) target = $region32
        $region31: #{tpu_custom_call.1} parent=23 // pred_region
          %s286 = sand.u32 %s29, 1
          %s287 = scalar_lea.sflag [#allocation6], %s286
          %s288 = sand.u32 %s65, 1
          %s289 = smul.addr %s288, 64
          %s290 = scalar_lea.vmem [#allocation5], %s289
          %s291 = smul.u32 8, %s29
          %s293 = ssub.s32 1024, 1024
          %294 = vsyncadd %s287, %s293
          %s295 = smul.addr %s291, 128
          %s296 = scalar_lea.hbm %s1, %s295
          %s297 = sshll.u32 %s290, 4
          %s298 = int_to_ptr.vmem [resolvable:$true] %s297
          %303 = dma.hbm_to_vmem [thread:$0]  %s296, 1024, %s298, %s287, 128, 128, 8
        $region32: #{tpu_custom_call.1} parent=23 // pred_fallthru
          _
        // Predicated region
        $region33: #{tpu_custom_call.1} parent=23 // pred_check
          %p304 = pneg %p101
        $region34: #{tpu_custom_call.1} parent=23 // pred_check_branch
          %306 = sbr.rel (%p304) target = $region36
        $region35: #{tpu_custom_call.1} parent=23 // pred_region
          %s307 = sand.u32 %s29, 1
          %s308 = scalar_lea.sflag [#allocation6], %s307
          %s309 = sand.u32 %s91, 1
          %s310 = smul.addr %s309, 64
          %s311 = scalar_lea.vmem [#allocation7], %s310
          %s312 = smul.u32 8, %s29
          %s314 = ssub.s32 1024, 1024
          %315 = vsyncadd %s308, %s314
          %s316 = smul.addr %s312, 128
          %s317 = scalar_lea.hbm %s2, %s316
          %s318 = sshll.u32 %s311, 4
          %s319 = int_to_ptr.vmem [resolvable:$true] %s318
          %324 = dma.hbm_to_vmem [thread:$0]  %s317, 1024, %s319, %s308, 128, 128, 8
        $region36: #{tpu_custom_call.1} parent=23 // pred_fallthru
          _
        // Predicated region
        $region37: #{tpu_custom_call.1} parent=23 // pred_check
          %p325 = pneg %p127
        $region38: #{tpu_custom_call.1} parent=23 // pred_check_branch
          %327 = sbr.rel (%p325) target = $region40
        $region39: #{tpu_custom_call.1} parent=23 // pred_region
          %s328 = sand.u32 %s29, 1
          %s329 = scalar_lea.sflag [#allocation9], %s328
          %s330 = sand.u32 %s117, 1
          %s331 = smul.addr %s330, 64
          %s332 = scalar_lea.vmem [#allocation8], %s331
          %s333 = smul.u32 8, %s29
          %s335 = ssub.s32 1024, 1024
          %336 = vsyncadd %s329, %s335
          %s337 = smul.addr %s333, 128
          %s338 = scalar_lea.hbm %s3, %s337
          %s339 = sshll.u32 %s332, 4
          %s340 = int_to_ptr.vmem [resolvable:$true] %s339
          %345 = dma.hbm_to_vmem [thread:$0]  %s338, 1024, %s340, %s329, 128, 128, 8
        $region40: #{tpu_custom_call.1} parent=23 // pred_fallthru
          _
      $region24: #{tpu_custom_call.1} parent=5 // pred_fallthru
        _
      %p346 = scmp.le.s32.totalorder 1, %s29
      %p347 = scmp.lt.s32.totalorder %s29, 4
      %p348 = pnand %p346, %p347
      %p349 = pneg %p348
      // Predicated region
      $region41: #{tpu_custom_call.1} parent=5 // pred_check
        _
      $region42: #{tpu_custom_call.1} parent=5 // pred_check_branch
        %351 = sbr.rel (%p348) target = $region44
      $region43: #{tpu_custom_call.1} parent=5 // pred_region
        %s352 = ssub.s32 %s29, 1
        %s353 = sand.u32 %s42, 1
        %s354 = scalar_lea.sflag [#allocation3], %s353
        %s355 = sand.u32 %s42, 1
        %s356 = smul.addr %s355, 64
        %s357 = scalar_lea.vmem [#allocation2], %s356
        // Predicated region
        $region45: #{tpu_custom_call.1} parent=43 // pred_check
          %p358 = pneg %p55
        $region46: #{tpu_custom_call.1} parent=43 // pred_check_branch
          %360 = sbr.rel (%p358) target = $region48
        $region47: #{tpu_custom_call.1} parent=43 // pred_region
          %361 = dma.done %s354, 1024
        $region48: #{tpu_custom_call.1} parent=43 // pred_fallthru
          _
        %s362 = sand.u32 %s34, 1
        %s363 = scalar_lea.sflag [#allocation6], %s362
        %s364 = sand.u32 %s68, 1
        %s365 = smul.addr %s364, 64
        %s366 = scalar_lea.vmem [#allocation5], %s365
        // Predicated region
        $region49: #{tpu_custom_call.1} parent=43 // pred_check
          %p367 = pneg %p81
        $region50: #{tpu_custom_call.1} parent=43 // pred_check_branch
          %369 = sbr.rel (%p367) target = $region52
        $region51: #{tpu_custom_call.1} parent=43 // pred_region
          %370 = dma.done %s363, 1024
        $region52: #{tpu_custom_call.1} parent=43 // pred_fallthru
          _
        %s371 = sand.u32 %s34, 1
        %s372 = scalar_lea.sflag [#allocation6], %s371
        %s373 = sand.u32 %s94, 1
        %s374 = smul.addr %s373, 64
        %s375 = scalar_lea.vmem [#allocation7], %s374
        // Predicated region
        $region53: #{tpu_custom_call.1} parent=43 // pred_check
          %p376 = pneg %p107
        $region54: #{tpu_custom_call.1} parent=43 // pred_check_branch
          %378 = sbr.rel (%p376) target = $region56
        $region55: #{tpu_custom_call.1} parent=43 // pred_region
          %379 = dma.done %s372, 1024
        $region56: #{tpu_custom_call.1} parent=43 // pred_fallthru
          _
        %s380 = sand.u32 %s34, 1
        %s381 = scalar_lea.sflag [#allocation9], %s380
        %s382 = sand.u32 %s120, 1
        %s383 = smul.addr %s382, 64
        %s384 = scalar_lea.vmem [#allocation8], %s383
        // Predicated region
        $region57: #{tpu_custom_call.1} parent=43 // pred_check
          %p385 = pneg %p133
        $region58: #{tpu_custom_call.1} parent=43 // pred_check_branch
          %387 = sbr.rel (%p385) target = $region60
        $region59: #{tpu_custom_call.1} parent=43 // pred_region
          %388 = dma.done %s381, 1024
        $region60: #{tpu_custom_call.1} parent=43 // pred_fallthru
          _
        // Predicated region
        $region61: #{tpu_custom_call.1} parent=43 // pred_check
          %p389 = pneg %p154
        $region62: #{tpu_custom_call.1} parent=43 // pred_check_branch
          %391 = sbr.rel (%p389) target = $region64
        $region63: #{tpu_custom_call.1} parent=43 // pred_region
          %392 = dma.done [#allocation9], 10240
        $region64: #{tpu_custom_call.1} parent=43 // pred_fallthru
          _
        %s393 = sand.u32 %s42, 1
        %s394 = scalar_lea.sflag [#allocation3], %s393
        %s395 = sand.u32 %s42, 1
        %s396 = smul.addr %s395, 64
        %s397 = scalar_lea.vmem [#allocation2], %s396
        %p398 = pneg %p55
        %p399 = pneg %p52
        %s400 = sand.u32 %s34, 1
        %s401 = scalar_lea.sflag [#allocation6], %s400
        %s402 = sand.u32 %s68, 1
        %s403 = smul.addr %s402, 64
        %s404 = scalar_lea.vmem [#allocation5], %s403
        %p405 = pneg %p81
        %p406 = pneg %p78
        %s407 = sand.u32 %s34, 1
        %s408 = scalar_lea.sflag [#allocation6], %s407
        %s409 = sand.u32 %s94, 1
        %s410 = smul.addr %s409, 64
        %s411 = scalar_lea.vmem [#allocation7], %s410
        %p412 = pneg %p107
        %p413 = pneg %p104
        %s414 = sand.u32 %s34, 1
        %s415 = scalar_lea.sflag [#allocation9], %s414
        %s416 = sand.u32 %s120, 1
        %s417 = smul.addr %s416, 64
        %s418 = scalar_lea.vmem [#allocation8], %s417
        %p419 = pneg %p133
        %p420 = pneg %p130
        %p421 = pneg %p154
        %p422 = pneg %p151
        %p423 = pneg %p175
        %p424 = pneg %p172
        %p425 = pneg %p201
        %p426 = pneg %p198
        %s427 = sand.u32 %s188, 1
        %s428 = scalar_lea.sflag [#allocation4], %s427
        %s429 = sand.u32 %s188, 1
        %s430 = smul.addr %s429, 64
        %s431 = scalar_lea.vmem [#allocation11], %s430
        %p432 = pneg %p227
        %p433 = pneg %p224
        %s434 = sand.u32 %s214, 1
        %s435 = scalar_lea.sflag [#allocation13], %s434
        %s436 = sand.u32 %s214, 1
        %s437 = smul.addr %s436, 64
        %s438 = scalar_lea.vmem [#allocation12], %s437
        %s439 = smul.u32 8, %s34
        %s440 = smul.u32 8, %s34
        %s441 = smul.u32 8, %s34
        %s442 = smul.u32 8, %s34
        %s443 = smul.u32 8, %s34
        %s444 = smul.u32 8, %s34
        %v446 = vld [vmem:[%s357] sm:$0xff]
        %v447 = vld [vmem:[%s357 + $0x8] sm:$0xff]
        %v448 = vld [vmem:[%s357 + $0x10] sm:$0xff]
        %v449 = vld [vmem:[%s357 + $0x18] sm:$0xff]
        %v450 = vld [vmem:[%s357 + $0x20] sm:$0xff]
        %v451 = vld [vmem:[%s357 + $0x28] sm:$0xff]
        %v452 = vld [vmem:[%s357 + $0x30] sm:$0xff]
        %v453 = vld [vmem:[%s357 + $0x38] sm:$0xff]
        %v454 = vpack.c.bf16 %v447, %v446
        %v455 = vpack.c.bf16 %v449, %v448
        %v456 = vpack.c.bf16 %v451, %v450
        %v457 = vpack.c.bf16 %v453, %v452
        %v458 = vld [vmem:[#allocation10] sm:$0xff]
        %v459 = vld [vmem:[#allocation10 + $0x8] sm:$0xff]
        %v460 = vld [vmem:[#allocation10 + $0x10] sm:$0xf]
        %v461 = vld [vmem:[#allocation10 + $0x14] sm:$0xff]
        %v462 = vld [vmem:[#allocation10 + $0x1c] sm:$0xff]
        %v463 = vld [vmem:[#allocation10 + $0x24] sm:$0xf]
        %v464 = vld [vmem:[#allocation10 + $0x28] sm:$0xff]
        %v465 = vld [vmem:[#allocation10 + $0x30] sm:$0xff]
        %v466 = vld [vmem:[#allocation10 + $0x38] sm:$0xf]
        %v467 = vld [vmem:[#allocation10 + $0x3c] sm:$0xff]
        %v468 = vld [vmem:[#allocation10 + $0x44] sm:$0xff]
        %v469 = vld [vmem:[#allocation10 + $0x4c] sm:$0xf]
        %v470 = vld [vmem:[#allocation10 + $0x50] sm:$0xff]
        %v471 = vld [vmem:[#allocation10 + $0x58] sm:$0xff]
        %v472 = vld [vmem:[#allocation10 + $0x60] sm:$0xf]
        %v473 = vld [vmem:[#allocation10 + $0x64] sm:$0xff]
        %v474 = vld [vmem:[#allocation10 + $0x6c] sm:$0xff]
        %v475 = vld [vmem:[#allocation10 + $0x74] sm:$0xf]
        %v476 = vld [vmem:[#allocation10 + $0x78] sm:$0xff]
        %v477 = vld [vmem:[#allocation10 + $0x80] sm:$0xff]
        %v478 = vld [vmem:[#allocation10 + $0x88] sm:$0xf]
        %v479 = vld [vmem:[#allocation10 + $0x8c] sm:$0xff]
        %v480 = vld [vmem:[#allocation10 + $0x94] sm:$0xff]
        %v481 = vld [vmem:[#allocation10 + $0x9c] sm:$0xf]
        %v482 = vld [vmem:[#allocation10 + $0xa0] sm:$0xff]
        %v483 = vld [vmem:[#allocation10 + $0xa8] sm:$0xff]
        %v484 = vld [vmem:[#allocation10 + $0xb0] sm:$0xf]
        %v485 = vld [vmem:[#allocation10 + $0xb4] sm:$0xff]
        %v486 = vld [vmem:[#allocation10 + $0xbc] sm:$0xff]
        %v487 = vld [vmem:[#allocation10 + $0xc4] sm:$0xf]
        %v488 = vld [vmem:[#allocation10 + $0xc8] sm:$0xff]
        %v489 = vld [vmem:[#allocation10 + $0xd0] sm:$0xff]
        %v490 = vld [vmem:[#allocation10 + $0xd8] sm:$0xf]
        %v491 = vld [vmem:[#allocation10 + $0xdc] sm:$0xff]
        %v492 = vld [vmem:[#allocation10 + $0xe4] sm:$0xff]
        %v493 = vld [vmem:[#allocation10 + $0xec] sm:$0xf]
        %v494 = vld [vmem:[#allocation10 + $0xf0] sm:$0xff]
        %v495 = vld [vmem:[#allocation10 + $0xf8] sm:$0xff]
        %v496 = vld [vmem:[#allocation10 + $0x100] sm:$0xf]
        %v497 = vld [vmem:[#allocation10 + $0x104] sm:$0xff]
        %v498 = vld [vmem:[#allocation10 + $0x10c] sm:$0xff]
        %v499 = vld [vmem:[#allocation10 + $0x114] sm:$0xf]
        %v500 = vld [vmem:[#allocation10 + $0x118] sm:$0xff]
        %v501 = vld [vmem:[#allocation10 + $0x120] sm:$0xff]
        %v502 = vld [vmem:[#allocation10 + $0x128] sm:$0xf]
        %v503 = vld [vmem:[#allocation10 + $0x12c] sm:$0xff]
        %v504 = vld [vmem:[#allocation10 + $0x134] sm:$0xff]
        %v505 = vld [vmem:[#allocation10 + $0x13c] sm:$0xf]
        %v506 = vld [vmem:[%s366] sm:$0xff]
        %v507 = vld [vmem:[%s366 + $0x8] sm:$0xff]
        %v508 = vld [vmem:[%s366 + $0x10] sm:$0xff]
        %v509 = vld [vmem:[%s366 + $0x18] sm:$0xff]
        %v510 = vld [vmem:[%s366 + $0x20] sm:$0xff]
        %v511 = vld [vmem:[%s366 + $0x28] sm:$0xff]
        %v512 = vld [vmem:[%s366 + $0x30] sm:$0xff]
        %v513 = vld [vmem:[%s366 + $0x38] sm:$0xff]
        %v514 = vpack.c.bf16 %v507, %v506
        %v515 = vpack.c.bf16 %v509, %v508
        %v516 = vpack.c.bf16 %v511, %v510
        %v517 = vpack.c.bf16 %v513, %v512
        %v518 = vld [vmem:[#allocation10 + $0x140] sm:$0xff]
        %v519 = vld [vmem:[#allocation10 + $0x148] sm:$0xff]
        %v520 = vld [vmem:[#allocation10 + $0x150] sm:$0xf]
        %v521 = vld [vmem:[#allocation10 + $0x154] sm:$0xff]
        %v522 = vld [vmem:[#allocation10 + $0x15c] sm:$0xff]
        %v523 = vld [vmem:[#allocation10 + $0x164] sm:$0xf]
        %v524 = vld [vmem:[#allocation10 + $0x168] sm:$0xff]
        %v525 = vld [vmem:[#allocation10 + $0x170] sm:$0xff]
        %v526 = vld [vmem:[#allocation10 + $0x178] sm:$0xf]
        %v527 = vld [vmem:[#allocation10 + $0x17c] sm:$0xff]
        %v528 = vld [vmem:[#allocation10 + $0x184] sm:$0xff]
        %v529 = vld [vmem:[#allocation10 + $0x18c] sm:$0xf]
        %v530 = vld [vmem:[#allocation10 + $0x190] sm:$0xff]
        %v531 = vld [vmem:[#allocation10 + $0x198] sm:$0xff]
        %v532 = vld [vmem:[#allocation10 + $0x1a0] sm:$0xf]
        %v533 = vld [vmem:[#allocation10 + $0x1a4] sm:$0xff]
        %v534 = vld [vmem:[#allocation10 + $0x1ac] sm:$0xff]
        %v535 = vld [vmem:[#allocation10 + $0x1b4] sm:$0xf]
        %v536 = vld [vmem:[#allocation10 + $0x1b8] sm:$0xff]
        %v537 = vld [vmem:[#allocation10 + $0x1c0] sm:$0xff]
        %v538 = vld [vmem:[#allocation10 + $0x1c8] sm:$0xf]
        %v539 = vld [vmem:[#allocation10 + $0x1cc] sm:$0xff]
        %v540 = vld [vmem:[#allocation10 + $0x1d4] sm:$0xff]
        %v541 = vld [vmem:[#allocation10 + $0x1dc] sm:$0xf]
        %v542 = vld [vmem:[#allocation10 + $0x1e0] sm:$0xff]
        %v543 = vld [vmem:[#allocation10 + $0x1e8] sm:$0xff]
        %v544 = vld [vmem:[#allocation10 + $0x1f0] sm:$0xf]
        %v545 = vld [vmem:[#allocation10 + $0x1f4] sm:$0xff]
        %v546 = vld [vmem:[#allocation10 + $0x1fc] sm:$0xff]
        %v547 = vld [vmem:[#allocation10 + $0x204] sm:$0xf]
        %v548 = vld [vmem:[#allocation10 + $0x208] sm:$0xff]
        %v549 = vld [vmem:[#allocation10 + $0x210] sm:$0xff]
        %v550 = vld [vmem:[#allocation10 + $0x218] sm:$0xf]
        %v551 = vld [vmem:[#allocation10 + $0x21c] sm:$0xff]
        %v552 = vld [vmem:[#allocation10 + $0x224] sm:$0xff]
        %v553 = vld [vmem:[#allocation10 + $0x22c] sm:$0xf]
        %v554 = vld [vmem:[#allocation10 + $0x230] sm:$0xff]
        %v555 = vld [vmem:[#allocation10 + $0x238] sm:$0xff]
        %v556 = vld [vmem:[#allocation10 + $0x240] sm:$0xf]
        %v557 = vld [vmem:[#allocation10 + $0x244] sm:$0xff]
        %v558 = vld [vmem:[#allocation10 + $0x24c] sm:$0xff]
        %v559 = vld [vmem:[#allocation10 + $0x254] sm:$0xf]
        %v560 = vld [vmem:[#allocation10 + $0x258] sm:$0xff]
        %v561 = vld [vmem:[#allocation10 + $0x260] sm:$0xff]
        %v562 = vld [vmem:[#allocation10 + $0x268] sm:$0xf]
        %v563 = vld [vmem:[#allocation10 + $0x26c] sm:$0xff]
        %v564 = vld [vmem:[#allocation10 + $0x274] sm:$0xff]
        %v565 = vld [vmem:[#allocation10 + $0x27c] sm:$0xf]
        %v614 = vunpack.c.l.b16 %v518
        %v615 = vunpack.c.h.b16 %v518
        %v616 = vunpack.c.l.b16 %v519
        %v617 = vunpack.c.h.b16 %v519
        %v618 = vunpack.c.l.b16 %v520
        %v619 = vunpack.c.l.b16 %v521
        %v620 = vunpack.c.h.b16 %v521
        %v621 = vunpack.c.l.b16 %v522
        %v622 = vunpack.c.h.b16 %v522
        %v623 = vunpack.c.l.b16 %v523
        %v624 = vunpack.c.l.b16 %v524
        %v625 = vunpack.c.h.b16 %v524
        %v626 = vunpack.c.l.b16 %v525
        %v627 = vunpack.c.h.b16 %v525
        %v628 = vunpack.c.l.b16 %v526
        %v629 = vunpack.c.l.b16 %v527
        %v630 = vunpack.c.h.b16 %v527
        %v631 = vunpack.c.l.b16 %v528
        %v632 = vunpack.c.h.b16 %v528
        %v633 = vunpack.c.l.b16 %v529
        %v634 = vunpack.c.l.b16 %v530
        %v635 = vunpack.c.h.b16 %v530
        %v636 = vunpack.c.l.b16 %v531
        %v637 = vunpack.c.h.b16 %v531
        %v638 = vunpack.c.l.b16 %v532
        %v639 = vunpack.c.l.b16 %v533
        %v640 = vunpack.c.h.b16 %v533
        %v641 = vunpack.c.l.b16 %v534
        %v642 = vunpack.c.h.b16 %v534
        %v643 = vunpack.c.l.b16 %v535
        %v644 = vunpack.c.l.b16 %v536
        %v645 = vunpack.c.h.b16 %v536
        %v646 = vunpack.c.l.b16 %v537
        %v647 = vunpack.c.h.b16 %v537
        %v648 = vunpack.c.l.b16 %v538
        %v649 = vunpack.c.l.b16 %v539
        %v650 = vunpack.c.h.b16 %v539
        %v651 = vunpack.c.l.b16 %v540
        %v652 = vunpack.c.h.b16 %v540
        %v653 = vunpack.c.l.b16 %v541
        %v654 = vunpack.c.l.b16 %v542
        %v655 = vunpack.c.h.b16 %v542
        %v656 = vunpack.c.l.b16 %v543
        %v657 = vunpack.c.h.b16 %v543
        %v658 = vunpack.c.l.b16 %v544
        %v659 = vunpack.c.l.b16 %v545
        %v660 = vunpack.c.h.b16 %v545
        %v661 = vunpack.c.l.b16 %v546
        %v662 = vunpack.c.h.b16 %v546
        %v663 = vunpack.c.l.b16 %v547
        %v664 = vunpack.c.l.b16 %v548
        %v665 = vunpack.c.h.b16 %v548
        %v666 = vunpack.c.l.b16 %v549
        %v667 = vunpack.c.h.b16 %v549
        %v668 = vunpack.c.l.b16 %v550
        %v669 = vunpack.c.l.b16 %v551
        %v670 = vunpack.c.h.b16 %v551
        %v671 = vunpack.c.l.b16 %v552
        %v672 = vunpack.c.h.b16 %v552
        %v673 = vunpack.c.l.b16 %v553
        %v674 = vunpack.c.l.b16 %v554
        %v675 = vunpack.c.h.b16 %v554
        %v676 = vunpack.c.l.b16 %v555
        %v677 = vunpack.c.h.b16 %v555
        %v678 = vunpack.c.l.b16 %v556
        %v679 = vunpack.c.l.b16 %v557
        %v680 = vunpack.c.h.b16 %v557
        %v681 = vunpack.c.l.b16 %v558
        %v682 = vunpack.c.h.b16 %v558
        %v683 = vunpack.c.l.b16 %v559
        %v684 = vunpack.c.l.b16 %v560
        %v685 = vunpack.c.h.b16 %v560
        %v686 = vunpack.c.l.b16 %v561
        %v687 = vunpack.c.h.b16 %v561
        %v688 = vunpack.c.l.b16 %v562
        %v689 = vunpack.c.l.b16 %v563
        %v690 = vunpack.c.h.b16 %v563
        %v691 = vunpack.c.l.b16 %v564
        %v692 = vunpack.c.h.b16 %v564
        %v693 = vunpack.c.l.b16 %v565
        %v694 = vpack.c.b16 %v619, %v614
        %v695 = vpack.c.b16 %v620, %v615
        %v696 = vpack.c.b16 %v621, %v616
        %v697 = vpack.c.b16 %v622, %v617
        %v698 = vpack.c.b16 %v623, %v618
        %v699 = vpack.c.b16 %v629, %v624
        %v700 = vpack.c.b16 %v630, %v625
        %v701 = vpack.c.b16 %v631, %v626
        %v702 = vpack.c.b16 %v632, %v627
        %v703 = vpack.c.b16 %v633, %v628
        %v704 = vpack.c.b16 %v639, %v634
        %v705 = vpack.c.b16 %v640, %v635
        %v706 = vpack.c.b16 %v641, %v636
        %v707 = vpack.c.b16 %v642, %v637
        %v708 = vpack.c.b16 %v643, %v638
        %v709 = vpack.c.b16 %v649, %v644
        %v710 = vpack.c.b16 %v650, %v645
        %v711 = vpack.c.b16 %v651, %v646
        %v712 = vpack.c.b16 %v652, %v647
        %v713 = vpack.c.b16 %v653, %v648
        %v714 = vpack.c.b16 %v659, %v654
        %v715 = vpack.c.b16 %v660, %v655
        %v716 = vpack.c.b16 %v661, %v656
        %v717 = vpack.c.b16 %v662, %v657
        %v718 = vpack.c.b16 %v663, %v658
        %v719 = vpack.c.b16 %v669, %v664
        %v720 = vpack.c.b16 %v670, %v665
        %v721 = vpack.c.b16 %v671, %v666
        %v722 = vpack.c.b16 %v672, %v667
        %v723 = vpack.c.b16 %v673, %v668
        %v724 = vpack.c.b16 %v679, %v674
        %v725 = vpack.c.b16 %v680, %v675
        %v726 = vpack.c.b16 %v681, %v676
        %v727 = vpack.c.b16 %v682, %v677
        %v728 = vpack.c.b16 %v683, %v678
        %v729 = vpack.c.b16 %v689, %v684
        %v730 = vpack.c.b16 %v690, %v685
        %v731 = vpack.c.b16 %v691, %v686
        %v732 = vpack.c.b16 %v692, %v687
        %v733 = vpack.c.b16 %v693, %v688
        %774 = vmatprep.subr.bf16.mxu0 %v695
        %775 = vmatpush1.bf16.msra.mxu0 %v694
        %776 = vmatprep.subr.bf16.mxu0 %v700
        %777 = vmatpush1.bf16.msra.mxu0 %v699
        %778 = vmatprep.subr.bf16.mxu0 %v705
        %779 = vmatpush1.bf16.msra.mxu0 %v704
        %780 = vmatprep.subr.bf16.mxu0 %v710
        %781 = vmatpush1.bf16.msra.mxu0 %v709
        %782 = vmatprep.subr.bf16.mxu0 %v715
        %783 = vmatpush1.bf16.msra.mxu0 %v714
        %784 = vmatprep.subr.bf16.mxu0 %v720
        %785 = vmatpush1.bf16.msra.mxu0 %v719
        %786 = vmatprep.subr.bf16.mxu0 %v725
        %787 = vmatpush1.bf16.msra.mxu0 %v724
        %788 = vmatprep.subr.bf16.mxu0 %v730
        %789 = vmatpush1.bf16.msra.mxu0 %v729
        %790 = vmatprep.subr.bf16.mxu0 0
        %791 = vmatpush1.bf16.msra.mxu0 0
        %792 = vmatprep.subr.bf16.mxu0 0
        %793 = vmatpush1.bf16.msra.mxu0 0
        %794 = vmatprep.subr.bf16.mxu0 0
        %795 = vmatpush1.bf16.msra.mxu0 0
        %796 = vmatprep.subr.bf16.mxu0 0
        %797 = vmatpush1.bf16.msra.mxu0 0
        %798 = vmatprep.subr.bf16.mxu0 0
        %799 = vmatpush1.bf16.msra.mxu0 0
        %800 = vmatprep.subr.bf16.mxu0 0
        %801 = vmatpush1.bf16.msra.mxu0 0
        %802 = vmatprep.subr.bf16.mxu0 0
        %803 = vmatpush1.bf16.msra.mxu0 0
        %804 = vmatprep.subr.bf16.mxu0 0
        %805 = vmatpush1.bf16.msra.mxu0 0
        %806 = vmatprep.mubr.bf16.mxu0 0
        %807 = vmatmul.mubr.bf16.gmra.mrb[0].mxu0 %v514
        %v808 = vpop.f32.mrb[0].mxu0
        %v809 = vadd.f32 0.0, %v808
        %v810 = vpop.f32.mrb[0].mxu0
        %v811 = vadd.f32 0.0, %v810
        %v812 = vpop.f32.mrb[0].mxu0
        %v813 = vadd.f32 0.0, %v812
        %v814 = vpop.f32.mrb[0].mxu0
        %v815 = vadd.f32 0.0, %v814
        %816 = vmatprep.mubr.bf16.mxu0 0
        %817 = vmatmul.mubr.bf16.gmra.mrb[0].mxu0 %v515
        %v818 = vpop.f32.mrb[0].mxu0
        %v819 = vadd.f32 0.0, %v818
        %v820 = vpop.f32.mrb[0].mxu0
        %v821 = vadd.f32 0.0, %v820
        %v822 = vpop.f32.mrb[0].mxu0
        %v823 = vadd.f32 0.0, %v822
        %v824 = vpop.f32.mrb[0].mxu0
        %v825 = vadd.f32 0.0, %v824
        %826 = vmatprep.mubr.bf16.mxu0 0
        %827 = vmatmul.mubr.bf16.gmra.mrb[0].mxu0 %v516
        %v828 = vpop.f32.mrb[0].mxu0
        %v829 = vadd.f32 0.0, %v828
        %v830 = vpop.f32.mrb[0].mxu0
        %v831 = vadd.f32 0.0, %v830
        %v832 = vpop.f32.mrb[0].mxu0
        %v833 = vadd.f32 0.0, %v832
        %v834 = vpop.f32.mrb[0].mxu0
        %v835 = vadd.f32 0.0, %v834
        %836 = vmatprep.mubr.bf16.mxu0 0
        %837 = vmatmul.mubr.bf16.gmra.mrb[0].mxu0 %v517
        %v838 = vpop.f32.mrb[0].mxu0
        %v839 = vadd.f32 0.0, %v838
        %v840 = vpop.f32.mrb[0].mxu0
        %v841 = vadd.f32 0.0, %v840
        %v842 = vpop.f32.mrb[0].mxu0
        %v843 = vadd.f32 0.0, %v842
        %v844 = vpop.f32.mrb[0].mxu0
        %v845 = vadd.f32 0.0, %v844
        %846 = vdwg.mxu0
        %847 = vmatprep.subr.bf16.mxu0 %v697
        %848 = vmatpush1.bf16.msra.mxu0 %v696
        %849 = vmatprep.subr.bf16.mxu0 %v702
        %850 = vmatpush1.bf16.msra.mxu0 %v701
        %851 = vmatprep.subr.bf16.mxu0 %v707
        %852 = vmatpush1.bf16.msra.mxu0 %v706
        %853 = vmatprep.subr.bf16.mxu0 %v712
        %854 = vmatpush1.bf16.msra.mxu0 %v711
        %855 = vmatprep.subr.bf16.mxu0 %v717
        %856 = vmatpush1.bf16.msra.mxu0 %v716
        %857 = vmatprep.subr.bf16.mxu0 %v722
        %858 = vmatpush1.bf16.msra.mxu0 %v721
        %859 = vmatprep.subr.bf16.mxu0 %v727
        %860 = vmatpush1.bf16.msra.mxu0 %v726
        %861 = vmatprep.subr.bf16.mxu0 %v732
        %862 = vmatpush1.bf16.msra.mxu0 %v731
        %863 = vmatprep.subr.bf16.mxu0 0
        %864 = vmatpush1.bf16.msra.mxu0 0
        %865 = vmatprep.subr.bf16.mxu0 0
        %866 = vmatpush1.bf16.msra.mxu0 0
        %867 = vmatprep.subr.bf16.mxu0 0
        %868 = vmatpush1.bf16.msra.mxu0 0
        %869 = vmatprep.subr.bf16.mxu0 0
        %870 = vmatpush1.bf16.msra.mxu0 0
        %871 = vmatprep.subr.bf16.mxu0 0
        %872 = vmatpush1.bf16.msra.mxu0 0
        %873 = vmatprep.subr.bf16.mxu0 0
        %874 = vmatpush1.bf16.msra.mxu0 0
        %875 = vmatprep.subr.bf16.mxu0 0
        %876 = vmatpush1.bf16.msra.mxu0 0
        %877 = vmatprep.subr.bf16.mxu0 0
        %878 = vmatpush1.bf16.msra.mxu0 0
        %879 = vmatprep.mubr.bf16.mxu0 0
        %880 = vmatmul.mubr.bf16.gmra.mrb[0].mxu0 %v514
        %v881 = vpop.f32.mrb[0].mxu0
        %v882 = vadd.f32 0.0, %v881
        %v883 = vpop.f32.mrb[0].mxu0
        %v884 = vadd.f32 0.0, %v883
        %v885 = vpop.f32.mrb[0].mxu0
        %v886 = vadd.f32 0.0, %v885
        %v887 = vpop.f32.mrb[0].mxu0
        %v888 = vadd.f32 0.0, %v887
        %889 = vmatprep.mubr.bf16.mxu0 0
        %890 = vmatmul.mubr.bf16.gmra.mrb[0].mxu0 %v515
        %v891 = vpop.f32.mrb[0].mxu0
        %v892 = vadd.f32 0.0, %v891
        %v893 = vpop.f32.mrb[0].mxu0
        %v894 = vadd.f32 0.0, %v893
        %v895 = vpop.f32.mrb[0].mxu0
        %v896 = vadd.f32 0.0, %v895
        %v897 = vpop.f32.mrb[0].mxu0
        %v898 = vadd.f32 0.0, %v897
        %899 = vmatprep.mubr.bf16.mxu0 0
        %900 = vmatmul.mubr.bf16.gmra.mrb[0].mxu0 %v516
        %v901 = vpop.f32.mrb[0].mxu0
        %v902 = vadd.f32 0.0, %v901
        %v903 = vpop.f32.mrb[0].mxu0
        %v904 = vadd.f32 0.0, %v903
        %v905 = vpop.f32.mrb[0].mxu0
        %v906 = vadd.f32 0.0, %v905
        %v907 = vpop.f32.mrb[0].mxu0
        %v908 = vadd.f32 0.0, %v907
        %909 = vmatprep.mubr.bf16.mxu0 0
        %910 = vmatmul.mubr.bf16.gmra.mrb[0].mxu0 %v517
        %v911 = vpop.f32.mrb[0].mxu0
        %v912 = vadd.f32 0.0, %v911
        %v913 = vpop.f32.mrb[0].mxu0
        %v914 = vadd.f32 0.0, %v913
        %v915 = vpop.f32.mrb[0].mxu0
        %v916 = vadd.f32 0.0, %v915
        %v917 = vpop.f32.mrb[0].mxu0
        %v918 = vadd.f32 0.0, %v917
        %919 = vdwg.mxu0
        %920 = vmatprep.subr.bf16.mxu0 0
        %921 = vmatpush1.bf16.msra.mxu0 %v698
        %922 = vmatprep.subr.bf16.mxu0 0
        %923 = vmatpush1.bf16.msra.mxu0 %v703
        %924 = vmatprep.subr.bf16.mxu0 0
        %925 = vmatpush1.bf16.msra.mxu0 %v708
        %926 = vmatprep.subr.bf16.mxu0 0
        %927 = vmatpush1.bf16.msra.mxu0 %v713
        %928 = vmatprep.subr.bf16.mxu0 0
        %929 = vmatpush1.bf16.msra.mxu0 %v718
        %930 = vmatprep.subr.bf16.mxu0 0
        %931 = vmatpush1.bf16.msra.mxu0 %v723
        %932 = vmatprep.subr.bf16.mxu0 0
        %933 = vmatpush1.bf16.msra.mxu0 %v728
        %934 = vmatprep.subr.bf16.mxu0 0
        %935 = vmatpush1.bf16.msra.mxu0 %v733
        %936 = vmatprep.subr.bf16.mxu0 0
        %937 = vmatpush1.bf16.msra.mxu0 0
        %938 = vmatprep.subr.bf16.mxu0 0
        %939 = vmatpush1.bf16.msra.mxu0 0
        %940 = vmatprep.subr.bf16.mxu0 0
        %941 = vmatpush1.bf16.msra.mxu0 0
        %942 = vmatprep.subr.bf16.mxu0 0
        %943 = vmatpush1.bf16.msra.mxu0 0
        %944 = vmatprep.subr.bf16.mxu0 0
        %945 = vmatpush1.bf16.msra.mxu0 0
        %946 = vmatprep.subr.bf16.mxu0 0
        %947 = vmatpush1.bf16.msra.mxu0 0
        %948 = vmatprep.subr.bf16.mxu0 0
        %949 = vmatpush1.bf16.msra.mxu0 0
        %950 = vmatprep.subr.bf16.mxu0 0
        %951 = vmatpush1.bf16.msra.mxu0 0
        %952 = vmatprep.mubr.bf16.mxu0 0
        %953 = vmatmul.mubr.bf16.gmra.mrb[0].mxu0 %v514
        %v954 = vpop.f32.mrb[0].mxu0
        %v955 = vadd.f32 0.0, %v954
        %v956 = vpop.f32.mrb[0].mxu0
        %v957 = vpop.f32.mrb[0].mxu0
        %v958 = vadd.f32 0.0, %v957
        %v959 = vpop.f32.mrb[0].mxu0
        %960 = vmatprep.mubr.bf16.mxu0 0
        %961 = vmatmul.mubr.bf16.gmra.mrb[0].mxu0 %v515
        %v962 = vpop.f32.mrb[0].mxu0
        %v963 = vadd.f32 0.0, %v962
        %v964 = vpop.f32.mrb[0].mxu0
        %v965 = vpop.f32.mrb[0].mxu0
        %v966 = vadd.f32 0.0, %v965
        %v967 = vpop.f32.mrb[0].mxu0
        %968 = vmatprep.mubr.bf16.mxu0 0
        %969 = vmatmul.mubr.bf16.gmra.mrb[0].mxu0 %v516
        %v970 = vpop.f32.mrb[0].mxu0
        %v971 = vadd.f32 0.0, %v970
        %v972 = vpop.f32.mrb[0].mxu0
        %v973 = vpop.f32.mrb[0].mxu0
        %v974 = vadd.f32 0.0, %v973
        %v975 = vpop.f32.mrb[0].mxu0
        %976 = vmatprep.mubr.bf16.mxu0 0
        %977 = vmatmul.mubr.bf16.gmra.mrb[0].mxu0 %v517
        %v978 = vpop.f32.mrb[0].mxu0
        %v979 = vadd.f32 0.0, %v978
        %v980 = vpop.f32.mrb[0].mxu0
        %v981 = vpop.f32.mrb[0].mxu0
        %v982 = vadd.f32 0.0, %v981
        %v983 = vpop.f32.mrb[0].mxu0
        %984 = vdwg.mxu0
        %v1033 = vunpack.c.l.b16 %v458
        %v1034 = vunpack.c.h.b16 %v458
        %v1035 = vunpack.c.l.b16 %v459
        %v1036 = vunpack.c.h.b16 %v459
        %v1037 = vunpack.c.l.b16 %v460
        %v1038 = vunpack.c.l.b16 %v461
        %v1039 = vunpack.c.h.b16 %v461
        %v1040 = vunpack.c.l.b16 %v462
        %v1041 = vunpack.c.h.b16 %v462
        %v1042 = vunpack.c.l.b16 %v463
        %v1043 = vunpack.c.l.b16 %v464
        %v1044 = vunpack.c.h.b16 %v464
        %v1045 = vunpack.c.l.b16 %v465
        %v1046 = vunpack.c.h.b16 %v465
        %v1047 = vunpack.c.l.b16 %v466
        %v1048 = vunpack.c.l.b16 %v467
        %v1049 = vunpack.c.h.b16 %v467
        %v1050 = vunpack.c.l.b16 %v468
        %v1051 = vunpack.c.h.b16 %v468
        %v1052 = vunpack.c.l.b16 %v469
        %v1053 = vunpack.c.l.b16 %v470
        %v1054 = vunpack.c.h.b16 %v470
        %v1055 = vunpack.c.l.b16 %v471
        %v1056 = vunpack.c.h.b16 %v471
        %v1057 = vunpack.c.l.b16 %v472
        %v1058 = vunpack.c.l.b16 %v473
        %v1059 = vunpack.c.h.b16 %v473
        %v1060 = vunpack.c.l.b16 %v474
        %v1061 = vunpack.c.h.b16 %v474
        %v1062 = vunpack.c.l.b16 %v475
        %v1063 = vunpack.c.l.b16 %v476
        %v1064 = vunpack.c.h.b16 %v476
        %v1065 = vunpack.c.l.b16 %v477
        %v1066 = vunpack.c.h.b16 %v477
        %v1067 = vunpack.c.l.b16 %v478
        %v1068 = vunpack.c.l.b16 %v479
        %v1069 = vunpack.c.h.b16 %v479
        %v1070 = vunpack.c.l.b16 %v480
        %v1071 = vunpack.c.h.b16 %v480
        %v1072 = vunpack.c.l.b16 %v481
        %v1073 = vunpack.c.l.b16 %v482
        %v1074 = vunpack.c.h.b16 %v482
        %v1075 = vunpack.c.l.b16 %v483
        %v1076 = vunpack.c.h.b16 %v483
        %v1077 = vunpack.c.l.b16 %v484
        %v1078 = vunpack.c.l.b16 %v485
        %v1079 = vunpack.c.h.b16 %v485
        %v1080 = vunpack.c.l.b16 %v486
        %v1081 = vunpack.c.h.b16 %v486
        %v1082 = vunpack.c.l.b16 %v487
        %v1083 = vunpack.c.l.b16 %v488
        %v1084 = vunpack.c.h.b16 %v488
        %v1085 = vunpack.c.l.b16 %v489
        %v1086 = vunpack.c.h.b16 %v489
        %v1087 = vunpack.c.l.b16 %v490
        %v1088 = vunpack.c.l.b16 %v491
        %v1089 = vunpack.c.h.b16 %v491
        %v1090 = vunpack.c.l.b16 %v492
        %v1091 = vunpack.c.h.b16 %v492
        %v1092 = vunpack.c.l.b16 %v493
        %v1093 = vunpack.c.l.b16 %v494
        %v1094 = vunpack.c.h.b16 %v494
        %v1095 = vunpack.c.l.b16 %v495
        %v1096 = vunpack.c.h.b16 %v495
        %v1097 = vunpack.c.l.b16 %v496
        %v1098 = vunpack.c.l.b16 %v497
        %v1099 = vunpack.c.h.b16 %v497
        %v1100 = vunpack.c.l.b16 %v498
        %v1101 = vunpack.c.h.b16 %v498
        %v1102 = vunpack.c.l.b16 %v499
        %v1103 = vunpack.c.l.b16 %v500
        %v1104 = vunpack.c.h.b16 %v500
        %v1105 = vunpack.c.l.b16 %v501
        %v1106 = vunpack.c.h.b16 %v501
        %v1107 = vunpack.c.l.b16 %v502
        %v1108 = vunpack.c.l.b16 %v503
        %v1109 = vunpack.c.h.b16 %v503
        %v1110 = vunpack.c.l.b16 %v504
        %v1111 = vunpack.c.h.b16 %v504
        %v1112 = vunpack.c.l.b16 %v505
        %v1113 = vpack.c.b16 %v1038, %v1033
        %v1114 = vpack.c.b16 %v1039, %v1034
        %v1115 = vpack.c.b16 %v1040, %v1035
        %v1116 = vpack.c.b16 %v1041, %v1036
        %v1117 = vpack.c.b16 %v1042, %v1037
        %v1118 = vpack.c.b16 %v1048, %v1043
        %v1119 = vpack.c.b16 %v1049, %v1044
        %v1120 = vpack.c.b16 %v1050, %v1045
        %v1121 = vpack.c.b16 %v1051, %v1046
        %v1122 = vpack.c.b16 %v1052, %v1047
        %v1123 = vpack.c.b16 %v1058, %v1053
        %v1124 = vpack.c.b16 %v1059, %v1054
        %v1125 = vpack.c.b16 %v1060, %v1055
        %v1126 = vpack.c.b16 %v1061, %v1056
        %v1127 = vpack.c.b16 %v1062, %v1057
        %v1128 = vpack.c.b16 %v1068, %v1063
        %v1129 = vpack.c.b16 %v1069, %v1064
        %v1130 = vpack.c.b16 %v1070, %v1065
        %v1131 = vpack.c.b16 %v1071, %v1066
        %v1132 = vpack.c.b16 %v1072, %v1067
        %v1133 = vpack.c.b16 %v1078, %v1073
        %v1134 = vpack.c.b16 %v1079, %v1074
        %v1135 = vpack.c.b16 %v1080, %v1075
        %v1136 = vpack.c.b16 %v1081, %v1076
        %v1137 = vpack.c.b16 %v1082, %v1077
        %v1138 = vpack.c.b16 %v1088, %v1083
        %v1139 = vpack.c.b16 %v1089, %v1084
        %v1140 = vpack.c.b16 %v1090, %v1085
        %v1141 = vpack.c.b16 %v1091, %v1086
        %v1142 = vpack.c.b16 %v1092, %v1087
        %v1143 = vpack.c.b16 %v1098, %v1093
        %v1144 = vpack.c.b16 %v1099, %v1094
        %v1145 = vpack.c.b16 %v1100, %v1095
        %v1146 = vpack.c.b16 %v1101, %v1096
        %v1147 = vpack.c.b16 %v1102, %v1097
        %v1148 = vpack.c.b16 %v1108, %v1103
        %v1149 = vpack.c.b16 %v1109, %v1104
        %v1150 = vpack.c.b16 %v1110, %v1105
        %v1151 = vpack.c.b16 %v1111, %v1106
        %v1152 = vpack.c.b16 %v1112, %v1107
        %1193 = vmatprep.subr.bf16.mxu0 %v1114
        %1194 = vmatpush1.bf16.msra.mxu0 %v1113
        %1195 = vmatprep.subr.bf16.mxu0 %v1119
        %1196 = vmatpush1.bf16.msra.mxu0 %v1118
        %1197 = vmatprep.subr.bf16.mxu0 %v1124
        %1198 = vmatpush1.bf16.msra.mxu0 %v1123
        %1199 = vmatprep.subr.bf16.mxu0 %v1129
        %1200 = vmatpush1.bf16.msra.mxu0 %v1128
        %1201 = vmatprep.subr.bf16.mxu0 %v1134
        %1202 = vmatpush1.bf16.msra.mxu0 %v1133
        %1203 = vmatprep.subr.bf16.mxu0 %v1139
        %1204 = vmatpush1.bf16.msra.mxu0 %v1138
        %1205 = vmatprep.subr.bf16.mxu0 %v1144
        %1206 = vmatpush1.bf16.msra.mxu0 %v1143
        %1207 = vmatprep.subr.bf16.mxu0 %v1149
        %1208 = vmatpush1.bf16.msra.mxu0 %v1148
        %1209 = vmatprep.subr.bf16.mxu0 0
        %1210 = vmatpush1.bf16.msra.mxu0 0
        %1211 = vmatprep.subr.bf16.mxu0 0
        %1212 = vmatpush1.bf16.msra.mxu0 0
        %1213 = vmatprep.subr.bf16.mxu0 0
        %1214 = vmatpush1.bf16.msra.mxu0 0
        %1215 = vmatprep.subr.bf16.mxu0 0
        %1216 = vmatpush1.bf16.msra.mxu0 0
        %1217 = vmatprep.subr.bf16.mxu0 0
        %1218 = vmatpush1.bf16.msra.mxu0 0
        %1219 = vmatprep.subr.bf16.mxu0 0
        %1220 = vmatpush1.bf16.msra.mxu0 0
        %1221 = vmatprep.subr.bf16.mxu0 0
        %1222 = vmatpush1.bf16.msra.mxu0 0
        %1223 = vmatprep.subr.bf16.mxu0 0
        %1224 = vmatpush1.bf16.msra.mxu0 0
        %1225 = vmatprep.mubr.bf16.mxu0 0
        %1226 = vmatmul.mubr.bf16.gmra.mrb[0].mxu0 %v454
        %v1227 = vpop.f32.mrb[0].mxu0
        %v1228 = vadd.f32 %v809, %v1227
        %v1229 = vpop.f32.mrb[0].mxu0
        %v1230 = vadd.f32 %v811, %v1229
        %v1231 = vpop.f32.mrb[0].mxu0
        %v1232 = vadd.f32 %v813, %v1231
        %v1233 = vpop.f32.mrb[0].mxu0
        %v1234 = vadd.f32 %v815, %v1233
        %1235 = vmatprep.mubr.bf16.mxu0 0
        %1236 = vmatmul.mubr.bf16.gmra.mrb[0].mxu0 %v455
        %v1237 = vpop.f32.mrb[0].mxu0
        %v1238 = vadd.f32 %v819, %v1237
        %v1239 = vpop.f32.mrb[0].mxu0
        %v1240 = vadd.f32 %v821, %v1239
        %v1241 = vpop.f32.mrb[0].mxu0
        %v1242 = vadd.f32 %v823, %v1241
        %v1243 = vpop.f32.mrb[0].mxu0
        %v1244 = vadd.f32 %v825, %v1243
        %1245 = vmatprep.mubr.bf16.mxu0 0
        %1246 = vmatmul.mubr.bf16.gmra.mrb[0].mxu0 %v456
        %v1247 = vpop.f32.mrb[0].mxu0
        %v1248 = vadd.f32 %v829, %v1247
        %v1249 = vpop.f32.mrb[0].mxu0
        %v1250 = vadd.f32 %v831, %v1249
        %v1251 = vpop.f32.mrb[0].mxu0
        %v1252 = vadd.f32 %v833, %v1251
        %v1253 = vpop.f32.mrb[0].mxu0
        %v1254 = vadd.f32 %v835, %v1253
        %1255 = vmatprep.mubr.bf16.mxu0 0
        %1256 = vmatmul.mubr.bf16.gmra.mrb[0].mxu0 %v457
        %v1257 = vpop.f32.mrb[0].mxu0
        %v1258 = vadd.f32 %v839, %v1257
        %v1259 = vpop.f32.mrb[0].mxu0
        %v1260 = vadd.f32 %v841, %v1259
        %v1261 = vpop.f32.mrb[0].mxu0
        %v1262 = vadd.f32 %v843, %v1261
        %v1263 = vpop.f32.mrb[0].mxu0
        %v1264 = vadd.f32 %v845, %v1263
        %1265 = vdwg.mxu0
        %1266 = vmatprep.subr.bf16.mxu0 %v1116
        %1267 = vmatpush1.bf16.msra.mxu0 %v1115
        %1268 = vmatprep.subr.bf16.mxu0 %v1121
        %1269 = vmatpush1.bf16.msra.mxu0 %v1120
        %1270 = vmatprep.subr.bf16.mxu0 %v1126
        %1271 = vmatpush1.bf16.msra.mxu0 %v1125
        %1272 = vmatprep.subr.bf16.mxu0 %v1131
        %1273 = vmatpush1.bf16.msra.mxu0 %v1130
        %1274 = vmatprep.subr.bf16.mxu0 %v1136
        %1275 = vmatpush1.bf16.msra.mxu0 %v1135
        %1276 = vmatprep.subr.bf16.mxu0 %v1141
        %1277 = vmatpush1.bf16.msra.mxu0 %v1140
        %1278 = vmatprep.subr.bf16.mxu0 %v1146
        %1279 = vmatpush1.bf16.msra.mxu0 %v1145
        %1280 = vmatprep.subr.bf16.mxu0 %v1151
        %1281 = vmatpush1.bf16.msra.mxu0 %v1150
        %1282 = vmatprep.subr.bf16.mxu0 0
        %1283 = vmatpush1.bf16.msra.mxu0 0
        %1284 = vmatprep.subr.bf16.mxu0 0
        %1285 = vmatpush1.bf16.msra.mxu0 0
        %1286 = vmatprep.subr.bf16.mxu0 0
        %1287 = vmatpush1.bf16.msra.mxu0 0
        %1288 = vmatprep.subr.bf16.mxu0 0
        %1289 = vmatpush1.bf16.msra.mxu0 0
        %1290 = vmatprep.subr.bf16.mxu0 0
        %1291 = vmatpush1.bf16.msra.mxu0 0
        %1292 = vmatprep.subr.bf16.mxu0 0
        %1293 = vmatpush1.bf16.msra.mxu0 0
        %1294 = vmatprep.subr.bf16.mxu0 0
        %1295 = vmatpush1.bf16.msra.mxu0 0
        %1296 = vmatprep.subr.bf16.mxu0 0
        %1297 = vmatpush1.bf16.msra.mxu0 0
        %1298 = vmatprep.mubr.bf16.mxu0 0
        %1299 = vmatmul.mubr.bf16.gmra.mrb[0].mxu0 %v454
        %v1300 = vpop.f32.mrb[0].mxu0
        %v1301 = vadd.f32 %v882, %v1300
        %v1302 = vpop.f32.mrb[0].mxu0
        %v1303 = vadd.f32 %v884, %v1302
        %v1304 = vpop.f32.mrb[0].mxu0
        %v1305 = vadd.f32 %v886, %v1304
        %v1306 = vpop.f32.mrb[0].mxu0
        %v1307 = vadd.f32 %v888, %v1306
        %1308 = vmatprep.mubr.bf16.mxu0 0
        %1309 = vmatmul.mubr.bf16.gmra.mrb[0].mxu0 %v455
        %v1310 = vpop.f32.mrb[0].mxu0
        %v1311 = vadd.f32 %v892, %v1310
        %v1312 = vpop.f32.mrb[0].mxu0
        %v1313 = vadd.f32 %v894, %v1312
        %v1314 = vpop.f32.mrb[0].mxu0
        %v1315 = vadd.f32 %v896, %v1314
        %v1316 = vpop.f32.mrb[0].mxu0
        %v1317 = vadd.f32 %v898, %v1316
        %1318 = vmatprep.mubr.bf16.mxu0 0
        %1319 = vmatmul.mubr.bf16.gmra.mrb[0].mxu0 %v456
        %v1320 = vpop.f32.mrb[0].mxu0
        %v1321 = vadd.f32 %v902, %v1320
        %v1322 = vpop.f32.mrb[0].mxu0
        %v1323 = vadd.f32 %v904, %v1322
        %v1324 = vpop.f32.mrb[0].mxu0
        %v1325 = vadd.f32 %v906, %v1324
        %v1326 = vpop.f32.mrb[0].mxu0
        %v1327 = vadd.f32 %v908, %v1326
        %1328 = vmatprep.mubr.bf16.mxu0 0
        %1329 = vmatmul.mubr.bf16.gmra.mrb[0].mxu0 %v457
        %v1330 = vpop.f32.mrb[0].mxu0
        %v1331 = vadd.f32 %v912, %v1330
        %v1332 = vpop.f32.mrb[0].mxu0
        %v1333 = vadd.f32 %v914, %v1332
        %v1334 = vpop.f32.mrb[0].mxu0
        %v1335 = vadd.f32 %v916, %v1334
        %v1336 = vpop.f32.mrb[0].mxu0
        %v1337 = vadd.f32 %v918, %v1336
        %1338 = vdwg.mxu0
        %1339 = vmatprep.subr.bf16.mxu0 0
        %1340 = vmatpush1.bf16.msra.mxu0 %v1117
        %1341 = vmatprep.subr.bf16.mxu0 0
        %1342 = vmatpush1.bf16.msra.mxu0 %v1122
        %1343 = vmatprep.subr.bf16.mxu0 0
        %1344 = vmatpush1.bf16.msra.mxu0 %v1127
        %1345 = vmatprep.subr.bf16.mxu0 0
        %1346 = vmatpush1.bf16.msra.mxu0 %v1132
        %1347 = vmatprep.subr.bf16.mxu0 0
        %1348 = vmatpush1.bf16.msra.mxu0 %v1137
        %1349 = vmatprep.subr.bf16.mxu0 0
        %1350 = vmatpush1.bf16.msra.mxu0 %v1142
        %1351 = vmatprep.subr.bf16.mxu0 0
        %1352 = vmatpush1.bf16.msra.mxu0 %v1147
        %1353 = vmatprep.subr.bf16.mxu0 0
        %1354 = vmatpush1.bf16.msra.mxu0 %v1152
        %1355 = vmatprep.subr.bf16.mxu0 0
        %1356 = vmatpush1.bf16.msra.mxu0 0
        %1357 = vmatprep.subr.bf16.mxu0 0
        %1358 = vmatpush1.bf16.msra.mxu0 0
        %1359 = vmatprep.subr.bf16.mxu0 0
        %1360 = vmatpush1.bf16.msra.mxu0 0
        %1361 = vmatprep.subr.bf16.mxu0 0
        %1362 = vmatpush1.bf16.msra.mxu0 0
        %1363 = vmatprep.subr.bf16.mxu0 0
        %1364 = vmatpush1.bf16.msra.mxu0 0
        %1365 = vmatprep.subr.bf16.mxu0 0
        %1366 = vmatpush1.bf16.msra.mxu0 0
        %1367 = vmatprep.subr.bf16.mxu0 0
        %1368 = vmatpush1.bf16.msra.mxu0 0
        %1369 = vmatprep.subr.bf16.mxu0 0
        %1370 = vmatpush1.bf16.msra.mxu0 0
        %1371 = vmatprep.mubr.bf16.mxu0 0
        %1372 = vmatmul.mubr.bf16.gmra.mrb[0].mxu0 %v454
        %v1373 = vpop.f32.mrb[0].mxu0
        %v1374 = vadd.f32 %v955, %v1373
        %v1375 = vpop.f32.mrb[0].mxu0
        %v1376 = vpop.f32.mrb[0].mxu0
        %v1377 = vadd.f32 %v958, %v1376
        %v1378 = vpop.f32.mrb[0].mxu0
        %1379 = vmatprep.mubr.bf16.mxu0 0
        %1380 = vmatmul.mubr.bf16.gmra.mrb[0].mxu0 %v455
        %v1381 = vpop.f32.mrb[0].mxu0
        %v1382 = vadd.f32 %v963, %v1381
        %v1383 = vpop.f32.mrb[0].mxu0
        %v1384 = vpop.f32.mrb[0].mxu0
        %v1385 = vadd.f32 %v966, %v1384
        %v1386 = vpop.f32.mrb[0].mxu0
        %1387 = vmatprep.mubr.bf16.mxu0 0
        %1388 = vmatmul.mubr.bf16.gmra.mrb[0].mxu0 %v456
        %v1389 = vpop.f32.mrb[0].mxu0
        %v1390 = vadd.f32 %v971, %v1389
        %v1391 = vpop.f32.mrb[0].mxu0
        %v1392 = vpop.f32.mrb[0].mxu0
        %v1393 = vadd.f32 %v974, %v1392
        %v1394 = vpop.f32.mrb[0].mxu0
        %1395 = vmatprep.mubr.bf16.mxu0 0
        %1396 = vmatmul.mubr.bf16.gmra.mrb[0].mxu0 %v457
        %v1397 = vpop.f32.mrb[0].mxu0
        %v1398 = vadd.f32 %v979, %v1397
        %v1399 = vpop.f32.mrb[0].mxu0
        %v1400 = vpop.f32.mrb[0].mxu0
        %v1401 = vadd.f32 %v982, %v1400
        %v1402 = vpop.f32.mrb[0].mxu0
        %1403 = vdwg.mxu0
        %v1404 = vld [vmem:[%s5] sm:$0x1f]
        %v1406 = vlaneseq
        %v1407 = vshrl.u32 %v1406, 7
        %v1408 = vsub.s32 0, %v1407
        %v1409 = vrot.slane %v1404, %v1408
        %v1410 = vlaneseq
        %v1411 = vshrl.u32 %v1410, 7
        %v1412 = vsub.s32 1, %v1411
        %v1413 = vrot.slane %v1404, %v1412
        %v1414 = vlaneseq
        %v1415 = vshrl.u32 %v1414, 7
        %v1416 = vsub.s32 2, %v1415
        %v1417 = vrot.slane %v1404, %v1416
        %v1418 = vlaneseq
        %v1419 = vshrl.u32 %v1418, 7
        %v1420 = vsub.s32 3, %v1419
        %v1421 = vrot.slane %v1404, %v1420
        %v1422 = vlaneseq
        %v1423 = vshrl.u32 %v1422, 7
        %v1424 = vsub.s32 4, %v1423
        %v1425 = vrot.slane %v1404, %v1424
        %v1431 = vadd.f32 %v1228, %v1409
        %v1432 = vadd.f32 %v1230, %v1413
        %v1433 = vadd.f32 %v1301, %v1417
        %v1434 = vadd.f32 %v1303, %v1421
        %v1435 = vadd.f32 %v1374, %v1425
        %v1436 = vadd.f32 %v1232, %v1409
        %v1437 = vadd.f32 %v1234, %v1413
        %v1438 = vadd.f32 %v1305, %v1417
        %v1439 = vadd.f32 %v1307, %v1421
        %v1440 = vadd.f32 %v1377, %v1425
        %v1441 = vadd.f32 %v1238, %v1409
        %v1442 = vadd.f32 %v1240, %v1413
        %v1443 = vadd.f32 %v1311, %v1417
        %v1444 = vadd.f32 %v1313, %v1421
        %v1445 = vadd.f32 %v1382, %v1425
        %v1446 = vadd.f32 %v1242, %v1409
        %v1447 = vadd.f32 %v1244, %v1413
        %v1448 = vadd.f32 %v1315, %v1417
        %v1449 = vadd.f32 %v1317, %v1421
        %v1450 = vadd.f32 %v1385, %v1425
        %v1451 = vadd.f32 %v1248, %v1409
        %v1452 = vadd.f32 %v1250, %v1413
        %v1453 = vadd.f32 %v1321, %v1417
        %v1454 = vadd.f32 %v1323, %v1421
        %v1455 = vadd.f32 %v1390, %v1425
        %v1456 = vadd.f32 %v1252, %v1409
        %v1457 = vadd.f32 %v1254, %v1413
        %v1458 = vadd.f32 %v1325, %v1417
        %v1459 = vadd.f32 %v1327, %v1421
        %v1460 = vadd.f32 %v1393, %v1425
        %v1461 = vadd.f32 %v1258, %v1409
        %v1462 = vadd.f32 %v1260, %v1413
        %v1463 = vadd.f32 %v1331, %v1417
        %v1464 = vadd.f32 %v1333, %v1421
        %v1465 = vadd.f32 %v1398, %v1425
        %v1466 = vadd.f32 %v1262, %v1409
        %v1467 = vadd.f32 %v1264, %v1413
        %v1468 = vadd.f32 %v1335, %v1417
        %v1469 = vadd.f32 %v1337, %v1421
        %v1470 = vadd.f32 %v1401, %v1425
        %v1471 = vld [vmem:[%s375] sm:$0xff]
        %v1472 = vld [vmem:[%s375 + $0x8] sm:$0xff]
        %v1473 = vld [vmem:[%s375 + $0x10] sm:$0xff]
        %v1474 = vld [vmem:[%s375 + $0x18] sm:$0xff]
        %v1475 = vld [vmem:[%s375 + $0x20] sm:$0xff]
        %v1476 = vld [vmem:[%s375 + $0x28] sm:$0xff]
        %v1477 = vld [vmem:[%s375 + $0x30] sm:$0xff]
        %v1478 = vld [vmem:[%s375 + $0x38] sm:$0xff]
        %v1479 = vld [vmem:[%s384] sm:$0xff]
        %v1480 = vld [vmem:[%s384 + $0x8] sm:$0xff]
        %v1481 = vld [vmem:[%s384 + $0x10] sm:$0xff]
        %v1482 = vld [vmem:[%s384 + $0x18] sm:$0xff]
        %v1483 = vld [vmem:[%s384 + $0x20] sm:$0xff]
        %v1484 = vld [vmem:[%s384 + $0x28] sm:$0xff]
        %v1485 = vld [vmem:[%s384 + $0x30] sm:$0xff]
        %v1486 = vld [vmem:[%s384 + $0x38] sm:$0xff]
        %v1487 = vtanh.pop %v1431
        %v1488 = vtanh.pop %v1436
        %v1489 = vtanh.pop %v1441
        %v1490 = vtanh.pop %v1446
        %v1491 = vtanh.pop %v1451
        %v1492 = vtanh.pop %v1456
        %v1493 = vtanh.pop %v1461
        %v1494 = vtanh.pop %v1466
        %v1495 = vmul.f32 %v1432, 0.5
        %v1496 = vmul.f32 %v1437, 0.5
        %v1497 = vmul.f32 %v1442, 0.5
        %v1498 = vmul.f32 %v1447, 0.5
        %v1499 = vmul.f32 %v1452, 0.5
        %v1500 = vmul.f32 %v1457, 0.5
        %v1501 = vmul.f32 %v1462, 0.5
        %v1502 = vmul.f32 %v1467, 0.5
        %v1503 = vtanh.pop %v1495
        %v1504 = vtanh.pop %v1496
        %v1505 = vtanh.pop %v1497
        %v1506 = vtanh.pop %v1498
        %v1507 = vtanh.pop %v1499
        %v1508 = vtanh.pop %v1500
        %v1509 = vtanh.pop %v1501
        %v1510 = vtanh.pop %v1502
        %v1511 = vmul.f32 %v1503, 0.5
        %v1512 = vmul.f32 %v1504, 0.5
        %v1513 = vmul.f32 %v1505, 0.5
        %v1514 = vmul.f32 %v1506, 0.5
        %v1515 = vmul.f32 %v1507, 0.5
        %v1516 = vmul.f32 %v1508, 0.5
        %v1517 = vmul.f32 %v1509, 0.5
        %v1518 = vmul.f32 %v1510, 0.5
        %v1519 = vadd.f32 %v1511, 0.5
        %v1520 = vadd.f32 %v1512, 0.5
        %v1521 = vadd.f32 %v1513, 0.5
        %v1522 = vadd.f32 %v1514, 0.5
        %v1523 = vadd.f32 %v1515, 0.5
        %v1524 = vadd.f32 %v1516, 0.5
        %v1525 = vadd.f32 %v1517, 0.5
        %v1526 = vadd.f32 %v1518, 0.5
        %v1527 = vmul.f32 %v1487, %v1519
        %v1528 = vmul.f32 %v1488, %v1520
        %v1529 = vmul.f32 %v1489, %v1521
        %v1530 = vmul.f32 %v1490, %v1522
        %v1531 = vmul.f32 %v1491, %v1523
        %v1532 = vmul.f32 %v1492, %v1524
        %v1533 = vmul.f32 %v1493, %v1525
        %v1534 = vmul.f32 %v1494, %v1526
        %v1535 = vmul.f32 %v1433, 0.5
        %v1536 = vmul.f32 %v1438, 0.5
        %v1537 = vmul.f32 %v1443, 0.5
        %v1538 = vmul.f32 %v1448, 0.5
        %v1539 = vmul.f32 %v1453, 0.5
        %v1540 = vmul.f32 %v1458, 0.5
        %v1541 = vmul.f32 %v1463, 0.5
        %v1542 = vmul.f32 %v1468, 0.5
        %v1543 = vtanh.pop %v1535
        %v1544 = vtanh.pop %v1536
        %v1545 = vtanh.pop %v1537
        %v1546 = vtanh.pop %v1538
        %v1547 = vtanh.pop %v1539
        %v1548 = vtanh.pop %v1540
        %v1549 = vtanh.pop %v1541
        %v1550 = vtanh.pop %v1542
        %v1551 = vmul.f32 %v1543, 0.5
        %v1552 = vmul.f32 %v1544, 0.5
        %v1553 = vmul.f32 %v1545, 0.5
        %v1554 = vmul.f32 %v1546, 0.5
        %v1555 = vmul.f32 %v1547, 0.5
        %v1556 = vmul.f32 %v1548, 0.5
        %v1557 = vmul.f32 %v1549, 0.5
        %v1558 = vmul.f32 %v1550, 0.5
        %v1559 = vadd.f32 %v1551, 0.5
        %v1560 = vadd.f32 %v1552, 0.5
        %v1561 = vadd.f32 %v1553, 0.5
        %v1562 = vadd.f32 %v1554, 0.5
        %v1563 = vadd.f32 %v1555, 0.5
        %v1564 = vadd.f32 %v1556, 0.5
        %v1565 = vadd.f32 %v1557, 0.5
        %v1566 = vadd.f32 %v1558, 0.5
        %v1567 = vmul.f32 %v1559, %v1471
        %v1568 = vmul.f32 %v1560, %v1472
        %v1569 = vmul.f32 %v1561, %v1473
        %v1570 = vmul.f32 %v1562, %v1474
        %v1571 = vmul.f32 %v1563, %v1475
        %v1572 = vmul.f32 %v1564, %v1476
        %v1573 = vmul.f32 %v1565, %v1477
        %v1574 = vmul.f32 %v1566, %v1478
        %v1575 = vadd.f32 %v1527, %v1567
        %v1576 = vadd.f32 %v1528, %v1568
        %v1577 = vadd.f32 %v1529, %v1569
        %v1578 = vadd.f32 %v1530, %v1570
        %v1579 = vadd.f32 %v1531, %v1571
        %v1580 = vadd.f32 %v1532, %v1572
        %v1581 = vadd.f32 %v1533, %v1573
        %v1582 = vadd.f32 %v1534, %v1574
        %v1583 = vmul.f32 %v1434, 0.5
        %v1584 = vmul.f32 %v1439, 0.5
        %v1585 = vmul.f32 %v1444, 0.5
        %v1586 = vmul.f32 %v1449, 0.5
        %v1587 = vmul.f32 %v1454, 0.5
        %v1588 = vmul.f32 %v1459, 0.5
        %v1589 = vmul.f32 %v1464, 0.5
        %v1590 = vmul.f32 %v1469, 0.5
        %v1591 = vtanh.pop %v1583
        %v1592 = vtanh.pop %v1584
        %v1593 = vtanh.pop %v1585
        %v1594 = vtanh.pop %v1586
        %v1595 = vtanh.pop %v1587
        %v1596 = vtanh.pop %v1588
        %v1597 = vtanh.pop %v1589
        %v1598 = vtanh.pop %v1590
        %v1599 = vmul.f32 %v1591, 0.5
        %v1600 = vmul.f32 %v1592, 0.5
        %v1601 = vmul.f32 %v1593, 0.5
        %v1602 = vmul.f32 %v1594, 0.5
        %v1603 = vmul.f32 %v1595, 0.5
        %v1604 = vmul.f32 %v1596, 0.5
        %v1605 = vmul.f32 %v1597, 0.5
        %v1606 = vmul.f32 %v1598, 0.5
        %v1607 = vadd.f32 %v1599, 0.5
        %v1608 = vadd.f32 %v1600, 0.5
        %v1609 = vadd.f32 %v1601, 0.5
        %v1610 = vadd.f32 %v1602, 0.5
        %v1611 = vadd.f32 %v1603, 0.5
        %v1612 = vadd.f32 %v1604, 0.5
        %v1613 = vadd.f32 %v1605, 0.5
        %v1614 = vadd.f32 %v1606, 0.5
        %v1615 = vmul.f32 %v1607, %v1479
        %v1616 = vmul.f32 %v1608, %v1480
        %v1617 = vmul.f32 %v1609, %v1481
        %v1618 = vmul.f32 %v1610, %v1482
        %v1619 = vmul.f32 %v1611, %v1483
        %v1620 = vmul.f32 %v1612, %v1484
        %v1621 = vmul.f32 %v1613, %v1485
        %v1622 = vmul.f32 %v1614, %v1486
        %v1623 = vadd.f32 %v1575, %v1615
        %v1624 = vadd.f32 %v1576, %v1616
        %v1625 = vadd.f32 %v1577, %v1617
        %v1626 = vadd.f32 %v1578, %v1618
        %v1627 = vadd.f32 %v1579, %v1619
        %v1628 = vadd.f32 %v1580, %v1620
        %v1629 = vadd.f32 %v1581, %v1621
        %v1630 = vadd.f32 %v1582, %v1622
        %v1631 = vmul.f32 %v1435, 0.5
        %v1632 = vmul.f32 %v1440, 0.5
        %v1633 = vmul.f32 %v1445, 0.5
        %v1634 = vmul.f32 %v1450, 0.5
        %v1635 = vmul.f32 %v1455, 0.5
        %v1636 = vmul.f32 %v1460, 0.5
        %v1637 = vmul.f32 %v1465, 0.5
        %v1638 = vmul.f32 %v1470, 0.5
        %v1639 = vtanh.pop %v1631
        %v1640 = vtanh.pop %v1632
        %v1641 = vtanh.pop %v1633
        %v1642 = vtanh.pop %v1634
        %v1643 = vtanh.pop %v1635
        %v1644 = vtanh.pop %v1636
        %v1645 = vtanh.pop %v1637
        %v1646 = vtanh.pop %v1638
        %v1647 = vmul.f32 %v1639, 0.5
        %v1648 = vmul.f32 %v1640, 0.5
        %v1649 = vmul.f32 %v1641, 0.5
        %v1650 = vmul.f32 %v1642, 0.5
        %v1651 = vmul.f32 %v1643, 0.5
        %v1652 = vmul.f32 %v1644, 0.5
        %v1653 = vmul.f32 %v1645, 0.5
        %v1654 = vmul.f32 %v1646, 0.5
        %v1655 = vadd.f32 %v1647, 0.5
        %v1656 = vadd.f32 %v1648, 0.5
        %v1657 = vadd.f32 %v1649, 0.5
        %v1658 = vadd.f32 %v1650, 0.5
        %v1659 = vadd.f32 %v1651, 0.5
        %v1660 = vadd.f32 %v1652, 0.5
        %v1661 = vadd.f32 %v1653, 0.5
        %v1662 = vadd.f32 %v1654, 0.5
        %v1663 = vtanh.pop %v1623
        %v1664 = vtanh.pop %v1624
        %v1665 = vtanh.pop %v1625
        %v1666 = vtanh.pop %v1626
        %v1667 = vtanh.pop %v1627
        %v1668 = vtanh.pop %v1628
        %v1669 = vtanh.pop %v1629
        %v1670 = vtanh.pop %v1630
        %v1671 = vmul.f32 %v1655, %v1663
        %v1672 = vmul.f32 %v1656, %v1664
        %v1673 = vmul.f32 %v1657, %v1665
        %v1674 = vmul.f32 %v1658, %v1666
        %v1675 = vmul.f32 %v1659, %v1667
        %v1676 = vmul.f32 %v1660, %v1668
        %v1677 = vmul.f32 %v1661, %v1669
        %v1678 = vmul.f32 %v1662, %v1670
        %1679 = vst [vmem:[%s438] sm:$0xff] %v1623
        %1680 = vst [vmem:[%s438 + $0x8] sm:$0xff] %v1624
        %1681 = vst [vmem:[%s438 + $0x10] sm:$0xff] %v1625
        %1682 = vst [vmem:[%s438 + $0x18] sm:$0xff] %v1626
        %1683 = vst [vmem:[%s438 + $0x20] sm:$0xff] %v1627
        %1684 = vst [vmem:[%s438 + $0x28] sm:$0xff] %v1628
        %1685 = vst [vmem:[%s438 + $0x30] sm:$0xff] %v1629
        %1686 = vst [vmem:[%s438 + $0x38] sm:$0xff] %v1630
        %1687 = vst [vmem:[%s431] sm:$0xff] %v1671
        %1688 = vst [vmem:[%s431 + $0x8] sm:$0xff] %v1672
        %1689 = vst [vmem:[%s431 + $0x10] sm:$0xff] %v1673
        %1690 = vst [vmem:[%s431 + $0x18] sm:$0xff] %v1674
        %1691 = vst [vmem:[%s431 + $0x20] sm:$0xff] %v1675
        %1692 = vst [vmem:[%s431 + $0x28] sm:$0xff] %v1676
        %1693 = vst [vmem:[%s431 + $0x30] sm:$0xff] %v1677
        %1694 = vst [vmem:[%s431 + $0x38] sm:$0xff] %v1678
        %s1695 = sand.u32 %s188, 1
        %s1696 = scalar_lea.sflag [#allocation4], %s1695
        %s1697 = sand.u32 %s188, 1
        %s1698 = smul.addr %s1697, 64
        %s1699 = scalar_lea.vmem [#allocation11], %s1698
        %s1700 = sand.u32 %s214, 1
        %s1701 = scalar_lea.sflag [#allocation13], %s1700
        %s1702 = sand.u32 %s214, 1
        %s1703 = smul.addr %s1702, 64
        %s1704 = scalar_lea.vmem [#allocation12], %s1703
        // Predicated region
        $region65: #{tpu_custom_call.1} parent=43 // pred_check
          %p1705 = pneg %p198
        $region66: #{tpu_custom_call.1} parent=43 // pred_check_branch
          %1707 = sbr.rel (%p1705) target = $region68
        $region67: #{tpu_custom_call.1} parent=43 // pred_region
          %s1708 = smul.u32 8, %s34
          %s1710 = ssub.s32 1024, 1024
          %1711 = vsyncadd %s1696, %s1710
          %s1712 = smul.addr %s1708, 128
          %s1713 = scalar_lea.hbm %s6, %s1712
          %s1714 = sshll.u32 %s1699, 4
          %s1715 = int_to_ptr.vmem [resolvable:$true] %s1714
          %1720 = dma.vmem_to_hbm [thread:$0]  %s1715, 1024, %s1713, %s1696, 128, 128, 8
        $region68: #{tpu_custom_call.1} parent=43 // pred_fallthru
          _
        // Predicated region
        $region69: #{tpu_custom_call.1} parent=43 // pred_check
          %p1721 = pneg %p224
        $region70: #{tpu_custom_call.1} parent=43 // pred_check_branch
          %1723 = sbr.rel (%p1721) target = $region72
        $region71: #{tpu_custom_call.1} parent=43 // pred_region
          %s1724 = smul.u32 8, %s34
          %s1726 = ssub.s32 1024, 1024
          %1727 = vsyncadd %s1701, %s1726
          %s1728 = smul.addr %s1724, 128
          %s1729 = scalar_lea.hbm %s7, %s1728
          %s1730 = sshll.u32 %s1704, 4
          %s1731 = int_to_ptr.vmem [resolvable:$true] %s1730
          %1736 = dma.vmem_to_hbm [thread:$0]  %s1731, 1024, %s1729, %s1701, 128, 128, 8
        $region72: #{tpu_custom_call.1} parent=43 // pred_fallthru
          _
      $region44: #{tpu_custom_call.1} parent=5 // pred_fallthru
        _
      %p1737 = scmp.le.s32.totalorder 2, %s29
      // Predicated region
      $region73: #{tpu_custom_call.1} parent=5 // pred_check
        %p1738 = pneg %p1737
      $region74: #{tpu_custom_call.1} parent=5 // pred_check_branch
        %1740 = sbr.rel (%p1738) target = $region76
      $region75: #{tpu_custom_call.1} parent=5 // pred_region
        %s1741 = ssub.s32 %s29, 2
        // Predicated region
        $region77: #{tpu_custom_call.1} parent=75 // pred_check
          %p1742 = pneg %p204
        $region78: #{tpu_custom_call.1} parent=75 // pred_check_branch
          %1744 = sbr.rel (%p1742) target = $region80
        $region79: #{tpu_custom_call.1} parent=75 // pred_region
          %s1745 = sand.u32 %s189, 1
          %s1746 = scalar_lea.sflag [#allocation4], %s1745
          %s1747 = sand.u32 %s189, 1
          %s1748 = smul.addr %s1747, 64
          %s1749 = scalar_lea.vmem [#allocation11], %s1748
          %1750 = dma.done %s1746, 1024
        $region80: #{tpu_custom_call.1} parent=75 // pred_fallthru
          _
        // Predicated region
        $region81: #{tpu_custom_call.1} parent=75 // pred_check
          %p1751 = pneg %p230
        $region82: #{tpu_custom_call.1} parent=75 // pred_check_branch
          %1753 = sbr.rel (%p1751) target = $region84
        $region83: #{tpu_custom_call.1} parent=75 // pred_region
          %s1754 = sand.u32 %s215, 1
          %s1755 = scalar_lea.sflag [#allocation13], %s1754
          %s1756 = sand.u32 %s215, 1
          %s1757 = smul.addr %s1756, 64
          %s1758 = scalar_lea.vmem [#allocation12], %s1757
          %1759 = dma.done %s1755, 1024
        $region84: #{tpu_custom_call.1} parent=75 // pred_fallthru
          _
      $region76: #{tpu_custom_call.1} parent=5 // pred_fallthru
        _
    $region6: #{tpu_custom_call.1} parent=1 // loop_footer
      %s33 = sadd.s32 1, %s29
    $region7: #{tpu_custom_call.1} parent=1 // loop_footer_branch
      %28 = sbr.rel target = $region3
    $region8: #{tpu_custom_call.1} parent=1 // loop_exit
      _
    %1760 = vsyncpa [#allocation3], 1
    %s1761 = scalar_lea.sflag [#allocation3], 1
    %1762 = vsyncpa %s1761, 1
    %1763 = vsyncpa [#allocation6], 1
    %s1764 = scalar_lea.sflag [#allocation6], 1
    %1765 = vsyncpa %s1764, 1
    %1766 = vsyncpa [#allocation9], 1
    %s1767 = scalar_lea.sflag [#allocation9], 1
    %1768 = vsyncpa %s1767, 1
    %1769 = vsyncpa [#allocation4], 1
    %s1770 = scalar_lea.sflag [#allocation4], 1
    %1771 = vsyncpa %s1770, 1
    %1772 = vsyncpa [#allocation13], 1
    %s1773 = scalar_lea.sflag [#allocation13], 1
    %1774 = vsyncpa %s1773, 1

</llo_original>
